<compile_context>
chip_gen: v7x
topology: tpu7x:2x2x1
jax: 0.10.0
libtpu: 0.0.40
codegen_flags: <defaults>
</compile_context>

<pallas_src>
import math
import functools
import numpy as np
import jax
import jax.numpy as jnp
from jax import lax
from jax.experimental import pallas as pl
from jax.experimental.pallas import tpu as pltpu


# ----------------------------- in-kernel helpers -----------------------------
def _layernorm(x, g, b, eps=1e-5):
    mu = jnp.mean(x, axis=-1, keepdims=True)
    var = jnp.mean((x - mu) ** 2, axis=-1, keepdims=True)
    return (x - mu) * lax.rsqrt(var + eps) * g + b


def _softmax_rows(s):
    m = jnp.max(s, axis=-1, keepdims=True)
    e = jnp.exp(s - m)
    # denominator >= 1 (contains exp(0)), so approx reciprocal is safe.
    return e * pl.reciprocal(jnp.sum(e, axis=-1, keepdims=True), approx=True)


def _gelu_tanh(x):
    # tanh-GELU: the tanh issues on the otherwise-idle EUP slot instead of a
    # ~10-op VALU erf polynomial.  |gelu_tanh - gelu_erf| < ~1e-3 per element.
    c = math.sqrt(2.0 / math.pi)
    return 0.5 * x * (1.0 + jnp.tanh(c * (x + 0.044715 * (x * x * x))))


# --------------------------------- kernel ------------------------------------
def _eeg_block_kernel(x_ref, wqkv_ref, bqkv_ref, wsq_ref, cwkv_ref, cbkv_ref,
                      w1_ref, b1_ref, w2_ref, ce_ref, vec_ref, o_ref, ctx_ref,
                      *, n_heads, ca_heads, compute_dtype):
    f32 = jnp.float32
    cdt = compute_dtype
    x = x_ref[...].astype(f32)                  # (S, D) : one batch element
    S, D = x.shape
    vec = vec_ref[...]                          # (10, D) packed biases / LN

    def row(i):                                 # (1, D) bias / LN param
        return vec[i:i + 1, :]

    def mm(a, b):                               # MXU dot, f32 accumulation
        return jnp.dot(a.astype(cdt), b.astype(cdt), preferred_element_type=f32)

    # ---------------- self attention (nn.MultiheadAttention) -----------------
    H, hd = n_heads, D // n_heads
    qkv = mm(x, wqkv_ref[...]) + bqkv_ref[...]                  # (S, 3D)
    q, k, v = qkv[:, :D], qkv[:, D:2 * D], qkv[:, 2 * D:]
    kT = k.T                                                    # (D, S), once
    inv_hd = 1.0 / math.sqrt(hd)
    # Per-head 2-D dots (H small & static) -> no Hx FLOP/VMEM blowup; heads
    # merged via lane-slice stores into VMEM scratch (no concatenates).
    for h in range(H):
        sl = slice(h * hd, (h + 1) * hd)
        s = mm(q[:, sl], kT[sl, :]) * inv_hd                    # (S, S)
        p = _softmax_rows(s)
        ctx_ref[:, sl] = mm(p, v[:, sl])                        # (S, hd)
    attended = mm(ctx_ref[...], wsq_ref[0]) + row(0)
    x1 = _layernorm(x + attended, row(4), row(5))

    # ---------------- channel attention --------------------------------------
    Hc, chd = ca_heads, D // ca_heads
    ce = ce_ref[...]                                            # (C, D)
    qc = mm(x1, wsq_ref[1]) + row(1)
    kvc = mm(ce, cwkv_ref[...]) + cbkv_ref[...]                 # (C, 2D)
    kc, vc = kvc[:, :D], kvc[:, D:]
    kcT = kc.T                                                  # (D, C)
    inv_chd = 1.0 / math.sqrt(chd)
    for h in range(Hc):
        sl = slice(h * chd, (h + 1) * chd)
        sc = mm(qc[:, sl], kcT[sl, :]) * inv_chd                # (S, C)
        pc = _softmax_rows(sc)                  # softmax over channels
        ctx_ref[:, sl] = mm(pc, vc[:, sl])                      # (S, chd)
    cout = mm(ctx_ref[...], wsq_ref[2]) + row(2)
    x2 = _layernorm(x1 + cout, row(6), row(7))

    # ---------------- feed forward --------------------------------------------
    # TODO(synk): dropout layers are identity (inference); training-mode
    # dropout would need pltpu.prng_seed / pltpu.stateful_bernoulli.
    hdn = _gelu_tanh(mm(x2, w1_ref[...]) + b1_ref[...])         # (S, d_ff)
    ff = mm(hdn, w2_ref[...]) + row(3)
    x3 = _layernorm(x2 + ff, row(8), row(9))

    o_ref[...] = x3.astype(o_ref.dtype)


# --------------------------------- wrapper ------------------------------------
def _pack_params(params, use_bf16):
    """Pack 27 small tensors into 10 kernel operands (fewer DMAs/refs).

    Matmul weight slabs are optionally cast to bf16 (MXU operands); biases
    and LayerNorm affine params stay f32 (added / applied in f32).
    """
    wdt = jnp.bfloat16 if use_bf16 else jnp.float32
    c = lambda a: a.astype(wdt)
    wqkv = c(jnp.concatenate([params["wq"], params["wk"], params["wv"]], axis=1))
    bqkv = jnp.concatenate([params["bq"], params["bk"], params["bv"]], axis=1)
    wsq = c(jnp.stack([params["wo"], params["cwq"], params["cwo"]], axis=0))
    cwkv = c(jnp.concatenate([params["cwk"], params["cwv"]], axis=1))
    cbkv = jnp.concatenate([params["cbk"], params["cbv"]], axis=1)
    vec = jnp.concatenate(
        [params["bo"], params["cbq"], params["cbo"], params["b2"],
         params["ln1g"], params["ln1b"], params["lncg"], params["lncb"],
         params["ln2g"], params["ln2b"]], axis=0)               # (10, D)
    return (wqkv, bqkv, wsq, cwkv, cbkv,
            c(params["w1"]), params["b1"], c(params["w2"]), c(params["ce"]), vec)


def _const_index_map(ndim):
    zeros = (0,) * ndim
    return lambda b: zeros


@functools.partial(jax.jit, static_argnames=("n_heads", "ca_heads", "use_bf16"))
def eeg_transformer_block(x, params, *, n_heads, ca_heads, use_bf16=True):
    B, S, D = x.shape
    C = params["ce"].shape[0]
    dff = params["w1"].shape[1]
    packed = _pack_params(params, use_bf16)
    cdt = jnp.bfloat16 if use_bf16 else jnp.float32

    kernel = functools.partial(_eeg_block_kernel, n_heads=n_heads,
                               ca_heads=ca_heads, compute_dtype=cdt)

    # x / out: one batch element per grid step; weights: VMEM-resident
    # (constant block index -> fetched once, not per step).
    in_specs = [pl.BlockSpec((None, S, D), lambda b: (b, 0, 0))]
    in_specs += [pl.BlockSpec(p.shape, _const_index_map(p.ndim)) for p in packed]
    out_spec = pl.BlockSpec((None, S, D), lambda b: (b, 0, 0))
    # NOTE: D=32 < 128 means the per-row output store is a masked vst; at the
    # production d_model=512 (multiple of 128) the store is lane-dense.

    weight_bytes = sum(int(p.size) * p.dtype.itemsize for p in packed)
    blk_bytes = S * D * x.dtype.itemsize
    vmem_limit = int(2 * weight_bytes + 4 * blk_bytes + S * D * 4) + (8 << 20)

    flops = 2 * B * (S * D * 3 * D        # fused QKV projection
                     + 2 * S * S * D      # attn scores + context
                     + 3 * S * D * D      # attn out, channel q, channel out
                     + 2 * C * D * D      # fused channel K/V projection
                     + 2 * S * C * D      # channel scores + context
                     + 2 * S * D * dff)   # FFN
    transc = B * (n_heads * S * S + ca_heads * S * C + S * dff
                  + (n_heads + ca_heads + 3) * S)
    bytes_acc = int(2 * x.size * x.dtype.itemsize + weight_bytes)

    out = pl.pallas_call(
        kernel,
        out_shape=jax.ShapeDtypeStruct((B, S, D), x.dtype),
        grid_spec=pltpu.PrefetchScalarGridSpec(
            num_scalar_prefetch=0,
            grid=(B,),
            in_specs=in_specs,
            out_specs=out_spec,
            scratch_shapes=[pltpu.VMEM((S, D), jnp.float32)]),
        compiler_params=pltpu.CompilerParams(
            dimension_semantics=("parallel",),
            vmem_limit_bytes=vmem_limit),
        cost_estimate=pl.CostEstimate(flops=int(flops),
                                      transcendentals=int(transc),
                                      bytes_accessed=bytes_acc),
    )(x, *packed)
    return out


# --------------------------- deterministic params -----------------------------
def init_params(key, d_model, d_ff, n_channels):
    def lin(k, fan_in, fan_out):
        k1, k2 = jax.random.split(k)
        w = jax.random.normal(k1, (fan_in, fan_out), jnp.float32) / math.sqrt(fan_in)
        b = 0.01 * jax.random.normal(k2, (1, fan_out), jnp.float32)
        return w, b

    keys = jax.random.split(key, 16)
    p = {}
    p["wq"], p["bq"] = lin(keys[0], d_model, d_model)
    p["wk"], p["bk"] = lin(keys[1], d_model, d_model)
    p["wv"], p["bv"] = lin(keys[2], d_model, d_model)
    p["wo"], p["bo"] = lin(keys[3], d_model, d_model)
    p["ln1g"] = jnp.ones((1, d_model), jnp.float32)
    p["ln1b"] = jnp.zeros((1, d_model), jnp.float32)
    p["ce"] = jax.random.normal(keys[4], (n_channels, d_model), jnp.float32)
    p["cwq"], p["cbq"] = lin(keys[5], d_model, d_model)
    p["cwk"], p["cbk"] = lin(keys[6], d_model, d_model)
    p["cwv"], p["cbv"] = lin(keys[7], d_model, d_model)
    p["cwo"], p["cbo"] = lin(keys[8], d_model, d_model)
    p["lncg"] = jnp.ones((1, d_model), jnp.float32)
    p["lncb"] = jnp.zeros((1, d_model), jnp.float32)
    p["w1"], p["b1"] = lin(keys[9], d_model, d_ff)
    p["w2"], p["b2"] = lin(keys[10], d_ff, d_model)
    p["ln2g"] = jnp.ones((1, d_model), jnp.float32)
    p["ln2b"] = jnp.zeros((1, d_model), jnp.float32)
    return p


# ---------------------------- pure-JAX reference ------------------------------
def reference_block(x, params, *, n_heads, ca_heads):
    hi = jax.lax.Precision.HIGHEST
    mm = lambda a, b: jnp.dot(a, b, precision=hi)
    B, S, D = x.shape
    hd = D // n_heads

    def ln(y, g, b, eps=1e-5):
        mu = y.mean(-1, keepdims=True)
        var = ((y - mu) ** 2).mean(-1, keepdims=True)
        return (y - mu) / jnp.sqrt(var + eps) * g + b

    q = (mm(x, params["wq"]) + params["bq"]).reshape(B, S, n_heads, hd)
    k = (mm(x, params["wk"]) + params["bk"]).reshape(B, S, n_heads, hd)
    v = (mm(x, params["wv"]) + params["bv"]).reshape(B, S, n_heads, hd)
    s = jnp.einsum("bqhd,bkhd->bhqk", q, k, precision=hi) / math.sqrt(hd)
    p = jax.nn.softmax(s, axis=-1)
    ctx = jnp.einsum("bhqk,bkhd->bqhd", p, v, precision=hi).reshape(B, S, D)
    attended = mm(ctx, params["wo"]) + params["bo"]
    x1 = ln(x + attended, params["ln1g"], params["ln1b"])

    ce = params["ce"]
    C = ce.shape[0]
    chd = D // ca_heads
    qc = (mm(x1, params["cwq"]) + params["cbq"]).reshape(B, S, ca_heads, chd)
    kc = (mm(ce, params["cwk"]) + params["cbk"]).reshape(C, ca_heads, chd)
    vc = (mm(ce, params["cwv"]) + params["cbv"]).reshape(C, ca_heads, chd)
    cs = jnp.einsum("bshd,chd->bsch", qc, kc, precision=hi) / math.sqrt(chd)
    cw = jax.nn.softmax(cs, axis=2)
    catt = jnp.einsum("bsch,chd->bshd", cw, vc, precision=hi).reshape(B, S, D)
    cout = mm(catt, params["cwo"]) + params["cbo"]
    x2 = ln(x1 + cout, params["lncg"], params["lncb"])

    h = mm(x2, params["w1"]) + params["b1"]
    h = 0.5 * h * (1.0 + jax.lax.erf(h / math.sqrt(2.0)))   # exact GELU (torch)
    ff = mm(h, params["w2"]) + params["b2"]
    return ln(x2 + ff, params["ln2g"], params["ln2b"])


# ------------------------------------ main -------------------------------------
if __name__ == "__main__":
    # Small config consistent with EEGFoundationConfig semantics.
    B, S, D = 2, 8, 32          # batch, seq_length (n_patches), d_model
    n_heads = 4                 # self-attention heads (D % n_heads == 0)
    ca_heads = 2                # channel_attention_heads
    d_ff = 64
    n_channels = 4

    key = jax.random.PRNGKey(0)
    kx, kp = jax.random.split(key)
    x = jax.random.normal(kx, (B, S, D), jnp.float32)
    params = init_params(kp, D, d_ff, n_channels)

    ref = reference_block(x, params, n_heads=n_heads, ca_heads=ca_heads)

    # f32 matmul operands (v5e-style path): tight tolerance.
    out_f32 = jax.block_until_ready(
        eeg_transformer_block(x, params, n_heads=n_heads, ca_heads=ca_heads,
                              use_bf16=False))
    assert out_f32.shape == (B, S, D)
    assert bool(jnp.all(jnp.isfinite(out_f32)))
    np.testing.assert_allclose(np.asarray(out_f32), np.asarray(ref),
                               rtol=5e-3, atol=5e-3)

    # bf16 matmul operands, f32 accumulation (v6e/v7x path): looser tolerance.
    out_bf16 = jax.block_until_ready(
        eeg_transformer_block(x, params, n_heads=n_heads, ca_heads=ca_heads,
                              use_bf16=True))
    assert bool(jnp.all(jnp.isfinite(out_bf16)))
    np.testing.assert_allclose(np.asarray(out_bf16), np.asarray(ref),
                               rtol=2.5e-2, atol=2.5e-2)

    print("KERNEL_OK")
</pallas_src>

<mosaic_0001>
module attributes {stable_mosaic.version = 11 : i64} {
  func.func @_eeg_block_kernel(%arg0: i32, %arg1: memref<1x8x32xf32, #tpu.memory_space<vmem>>, %arg2: memref<32x96xf32, #tpu.memory_space<vmem>>, %arg3: memref<1x96xf32, #tpu.memory_space<vmem>>, %arg4: memref<3x32x32xf32, #tpu.memory_space<vmem>>, %arg5: memref<32x64xf32, #tpu.memory_space<vmem>>, %arg6: memref<1x64xf32, #tpu.memory_space<vmem>>, %arg7: memref<32x64xf32, #tpu.memory_space<vmem>>, %arg8: memref<1x64xf32, #tpu.memory_space<vmem>>, %arg9: memref<64x32xf32, #tpu.memory_space<vmem>>, %arg10: memref<4x32xf32, #tpu.memory_space<vmem>>, %arg11: memref<10x32xf32, #tpu.memory_space<vmem>>, %arg12: memref<1x8x32xf32, #tpu.memory_space<vmem>>, %arg13: memref<8x32xf32, #tpu.memory_space<vmem>>) attributes {dimension_semantics = [#tpu.dimension_semantics<parallel>], iteration_bounds = array<i64: 2>, scalar_prefetch = 0 : i64, scratch_operands = 1 : i64, tpu.core_type = #tpu.core_type<tc>, window_params = [{transform_indices = @transform_0, window_bounds = array<i64: 1, 8, 32>}, {pipeline_mode = #tpu.pipeline_mode<synchronous>, transform_indices = @transform_1, window_bounds = array<i64: 32, 96>}, {pipeline_mode = #tpu.pipeline_mode<synchronous>, transform_indices = @transform_2, window_bounds = array<i64: 1, 96>}, {pipeline_mode = #tpu.pipeline_mode<synchronous>, transform_indices = @transform_3, window_bounds = array<i64: 3, 32, 32>}, {pipeline_mode = #tpu.pipeline_mode<synchronous>, transform_indices = @transform_4, window_bounds = array<i64: 32, 64>}, {pipeline_mode = #tpu.pipeline_mode<synchronous>, transform_indices = @transform_5, window_bounds = array<i64: 1, 64>}, {pipeline_mode = #tpu.pipeline_mode<synchronous>, transform_indices = @transform_6, window_bounds = array<i64: 32, 64>}, {pipeline_mode = #tpu.pipeline_mode<synchronous>, transform_indices = @transform_7, window_bounds = array<i64: 1, 64>}, {pipeline_mode = #tpu.pipeline_mode<synchronous>, transform_indices = @transform_8, window_bounds = array<i64: 64, 32>}, {pipeline_mode = #tpu.pipeline_mode<synchronous>, transform_indices = @transform_9, window_bounds = array<i64: 4, 32>}, {pipeline_mode = #tpu.pipeline_mode<synchronous>, transform_indices = @transform_10, window_bounds = array<i64: 10, 32>}, {transform_indices = @transform_11, window_bounds = array<i64: 1, 8, 32>}]} {
    %c0 = arith.constant 0 : index
    %c0_0 = arith.constant 0 : index
    %c0_1 = arith.constant 0 : index
    %0 = vector.load %arg1[%c0, %c0_0, %c0_1] : memref<1x8x32xf32, #tpu.memory_space<vmem>>, vector<1x8x32xf32>
    %1 = vector.shape_cast %0 : vector<1x8x32xf32> to vector<8x32xf32>
    %c0_2 = arith.constant 0 : index
    %c0_3 = arith.constant 0 : index
    %2 = vector.load %arg11[%c0_2, %c0_3] : memref<10x32xf32, #tpu.memory_space<vmem>>, vector<10x32xf32>
    %c0_4 = arith.constant 0 : index
    %c0_5 = arith.constant 0 : index
    %3 = vector.load %arg2[%c0_4, %c0_5] : memref<32x96xf32, #tpu.memory_space<vmem>>, vector<32x96xf32>
    %cst = arith.constant dense<0.000000e+00> : vector<8x96xf32>
    %4 = tpu.matmul %1, %3, %cst {dimension_numbers = #tpu.dot_dimension_numbers<[1], [0], [0], [1], [0, 0, 1, 1], [], []>} : vector<8x32xf32>, vector<32x96xf32>, vector<8x96xf32> -> vector<8x96xf32>
    %c0_6 = arith.constant 0 : index
    %c0_7 = arith.constant 0 : index
    %5 = vector.load %arg3[%c0_6, %c0_7] : memref<1x96xf32, #tpu.memory_space<vmem>>, vector<1x96xf32>
    %6 = vector.broadcast %5 : vector<1x96xf32> to vector<8x96xf32>
    %7 = arith.addf %4, %6 : vector<8x96xf32>
    %8 = vector.extract_strided_slice %7 {offsets = [0, 0], sizes = [8, 32], strides = [1, 1]} : vector<8x96xf32> to vector<8x32xf32>
    %9 = vector.extract_strided_slice %7 {offsets = [0, 32], sizes = [8, 32], strides = [1, 1]} : vector<8x96xf32> to vector<8x32xf32>
    %10 = vector.extract_strided_slice %7 {offsets = [0, 64], sizes = [8, 32], strides = [1, 1]} : vector<8x96xf32> to vector<8x32xf32>
    %11 = tpu.transpose %9, [1, 0] : vector<8x32xf32> -> vector<32x8xf32>
    %12 = vector.extract_strided_slice %8 {offsets = [0, 0], sizes = [8, 8], strides = [1, 1]} : vector<8x32xf32> to vector<8x8xf32>
    %13 = vector.extract_strided_slice %11 {offsets = [0, 0], sizes = [8, 8], strides = [1, 1]} : vector<32x8xf32> to vector<8x8xf32>
    %cst_8 = arith.constant dense<0.000000e+00> : vector<8x8xf32>
    %14 = tpu.matmul %12, %13, %cst_8 {dimension_numbers = #tpu.dot_dimension_numbers<[1], [0], [0], [1], [0, 0, 1, 1], [], []>} : vector<8x8xf32>, vector<8x8xf32>, vector<8x8xf32> -> vector<8x8xf32>
    %cst_9 = arith.constant 0.353553385 : f32
    %15 = vector.broadcast %cst_9 : f32 to vector<8x8xf32>
    %16 = arith.mulf %14, %15 : vector<8x8xf32>
    %cst_10 = arith.constant dense<0xFF800000> : vector<8xf32>
    %17 = vector.multi_reduction <maximumf>, %16, %cst_10 [1] : vector<8x8xf32> to vector<8xf32>
    %18 = vector.shape_cast %17 : vector<8xf32> to vector<8x1xf32>
    %19 = vector.broadcast %18 : vector<8x1xf32> to vector<8x8xf32>
    %20 = arith.subf %16, %19 : vector<8x8xf32>
    %21 = math.exp %20 : vector<8x8xf32>
    %cst_11 = arith.constant dense<0.000000e+00> : vector<8xf32>
    %22 = vector.multi_reduction <add>, %21, %cst_11 [1] : vector<8x8xf32> to vector<8xf32>
    %23 = vector.shape_cast %22 : vector<8xf32> to vector<8x1xf32>
    %24 = tpu.reciprocal %23 {approx = true} : vector<8x1xf32> -> vector<8x1xf32>
    %25 = vector.broadcast %24 : vector<8x1xf32> to vector<8x8xf32>
    %26 = arith.mulf %21, %25 : vector<8x8xf32>
    %27 = vector.extract_strided_slice %10 {offsets = [0, 0], sizes = [8, 8], strides = [1, 1]} : vector<8x32xf32> to vector<8x8xf32>
    %cst_12 = arith.constant dense<0.000000e+00> : vector<8x8xf32>
    %28 = tpu.matmul %26, %27, %cst_12 {dimension_numbers = #tpu.dot_dimension_numbers<[1], [0], [0], [1], [0, 0, 1, 1], [], []>} : vector<8x8xf32>, vector<8x8xf32>, vector<8x8xf32> -> vector<8x8xf32>
    %c0_13 = arith.constant 0 : index
    %c0_14 = arith.constant 0 : index
    %29 = vector.load %arg13[%c0_13, %c0_14] : memref<8x32xf32, #tpu.memory_space<vmem>>, vector<8x8xf32>
    tpu.vector_store %arg13[%c0_13, %c0_14], %28 {strides = array<i32>} : memref<8x32xf32, #tpu.memory_space<vmem>>, vector<8x8xf32>,
    %30 = vector.extract_strided_slice %8 {offsets = [0, 8], sizes = [8, 8], strides = [1, 1]} : vector<8x32xf32> to vector<8x8xf32>
    %31 = vector.extract_strided_slice %11 {offsets = [8, 0], sizes = [8, 8], strides = [1, 1]} : vector<32x8xf32> to vector<8x8xf32>
    %cst_15 = arith.constant dense<0.000000e+00> : vector<8x8xf32>
    %32 = tpu.matmul %30, %31, %cst_15 {dimension_numbers = #tpu.dot_dimension_numbers<[1], [0], [0], [1], [0, 0, 1, 1], [], []>} : vector<8x8xf32>, vector<8x8xf32>, vector<8x8xf32> -> vector<8x8xf32>
    %cst_16 = arith.constant 0.353553385 : f32
    %33 = vector.broadcast %cst_16 : f32 to vector<8x8xf32>
    %34 = arith.mulf %32, %33 : vector<8x8xf32>
    %cst_17 = arith.constant dense<0xFF800000> : vector<8xf32>
    %35 = vector.multi_reduction <maximumf>, %34, %cst_17 [1] : vector<8x8xf32> to vector<8xf32>
    %36 = vector.shape_cast %35 : vector<8xf32> to vector<8x1xf32>
    %37 = vector.broadcast %36 : vector<8x1xf32> to vector<8x8xf32>
    %38 = arith.subf %34, %37 : vector<8x8xf32>
    %39 = math.exp %38 : vector<8x8xf32>
    %cst_18 = arith.constant dense<0.000000e+00> : vector<8xf32>
    %40 = vector.multi_reduction <add>, %39, %cst_18 [1] : vector<8x8xf32> to vector<8xf32>
    %41 = vector.shape_cast %40 : vector<8xf32> to vector<8x1xf32>
    %42 = tpu.reciprocal %41 {approx = true} : vector<8x1xf32> -> vector<8x1xf32>
    %43 = vector.broadcast %42 : vector<8x1xf32> to vector<8x8xf32>
    %44 = arith.mulf %39, %43 : vector<8x8xf32>
    %45 = vector.extract_strided_slice %10 {offsets = [0, 8], sizes = [8, 8], strides = [1, 1]} : vector<8x32xf32> to vector<8x8xf32>
    %cst_19 = arith.constant dense<0.000000e+00> : vector<8x8xf32>
    %46 = tpu.matmul %44, %45, %cst_19 {dimension_numbers = #tpu.dot_dimension_numbers<[1], [0], [0], [1], [0, 0, 1, 1], [], []>} : vector<8x8xf32>, vector<8x8xf32>, vector<8x8xf32> -> vector<8x8xf32>
    %c0_20 = arith.constant 0 : index
    %c8 = arith.constant 8 : index
    %47 = vector.load %arg13[%c0_20, %c8] : memref<8x32xf32, #tpu.memory_space<vmem>>, vector<8x8xf32>
    tpu.vector_store %arg13[%c0_20, %c8], %46 {strides = array<i32>} : memref<8x32xf32, #tpu.memory_space<vmem>>, vector<8x8xf32>,
    %48 = vector.extract_strided_slice %8 {offsets = [0, 16], sizes = [8, 8], strides = [1, 1]} : vector<8x32xf32> to vector<8x8xf32>
    %49 = vector.extract_strided_slice %11 {offsets = [16, 0], sizes = [8, 8], strides = [1, 1]} : vector<32x8xf32> to vector<8x8xf32>
    %cst_21 = arith.constant dense<0.000000e+00> : vector<8x8xf32>
    %50 = tpu.matmul %48, %49, %cst_21 {dimension_numbers = #tpu.dot_dimension_numbers<[1], [0], [0], [1], [0, 0, 1, 1], [], []>} : vector<8x8xf32>, vector<8x8xf32>, vector<8x8xf32> -> vector<8x8xf32>
    %cst_22 = arith.constant 0.353553385 : f32
    %51 = vector.broadcast %cst_22 : f32 to vector<8x8xf32>
    %52 = arith.mulf %50, %51 : vector<8x8xf32>
    %cst_23 = arith.constant dense<0xFF800000> : vector<8xf32>
    %53 = vector.multi_reduction <maximumf>, %52, %cst_23 [1] : vector<8x8xf32> to vector<8xf32>
    %54 = vector.shape_cast %53 : vector<8xf32> to vector<8x1xf32>
    %55 = vector.broadcast %54 : vector<8x1xf32> to vector<8x8xf32>
    %56 = arith.subf %52, %55 : vector<8x8xf32>
    %57 = math.exp %56 : vector<8x8xf32>
    %cst_24 = arith.constant dense<0.000000e+00> : vector<8xf32>
    %58 = vector.multi_reduction <add>, %57, %cst_24 [1] : vector<8x8xf32> to vector<8xf32>
    %59 = vector.shape_cast %58 : vector<8xf32> to vector<8x1xf32>
    %60 = tpu.reciprocal %59 {approx = true} : vector<8x1xf32> -> vector<8x1xf32>
    %61 = vector.broadcast %60 : vector<8x1xf32> to vector<8x8xf32>
    %62 = arith.mulf %57, %61 : vector<8x8xf32>
    %63 = vector.extract_strided_slice %10 {offsets = [0, 16], sizes = [8, 8], strides = [1, 1]} : vector<8x32xf32> to vector<8x8xf32>
    %cst_25 = arith.constant dense<0.000000e+00> : vector<8x8xf32>
    %64 = tpu.matmul %62, %63, %cst_25 {dimension_numbers = #tpu.dot_dimension_numbers<[1], [0], [0], [1], [0, 0, 1, 1], [], []>} : vector<8x8xf32>, vector<8x8xf32>, vector<8x8xf32> -> vector<8x8xf32>
    %c0_26 = arith.constant 0 : index
    %c16 = arith.constant 16 : index
    %65 = vector.load %arg13[%c0_26, %c16] : memref<8x32xf32, #tpu.memory_space<vmem>>, vector<8x8xf32>
    tpu.vector_store %arg13[%c0_26, %c16], %64 {strides = array<i32>} : memref<8x32xf32, #tpu.memory_space<vmem>>, vector<8x8xf32>,
    %66 = vector.extract_strided_slice %8 {offsets = [0, 24], sizes = [8, 8], strides = [1, 1]} : vector<8x32xf32> to vector<8x8xf32>
    %67 = vector.extract_strided_slice %11 {offsets = [24, 0], sizes = [8, 8], strides = [1, 1]} : vector<32x8xf32> to vector<8x8xf32>
    %cst_27 = arith.constant dense<0.000000e+00> : vector<8x8xf32>
    %68 = tpu.matmul %66, %67, %cst_27 {dimension_numbers = #tpu.dot_dimension_numbers<[1], [0], [0], [1], [0, 0, 1, 1], [], []>} : vector<8x8xf32>, vector<8x8xf32>, vector<8x8xf32> -> vector<8x8xf32>
    %cst_28 = arith.constant 0.353553385 : f32
    %69 = vector.broadcast %cst_28 : f32 to vector<8x8xf32>
    %70 = arith.mulf %68, %69 : vector<8x8xf32>
    %cst_29 = arith.constant dense<0xFF800000> : vector<8xf32>
    %71 = vector.multi_reduction <maximumf>, %70, %cst_29 [1] : vector<8x8xf32> to vector<8xf32>
    %72 = vector.shape_cast %71 : vector<8xf32> to vector<8x1xf32>
    %73 = vector.broadcast %72 : vector<8x1xf32> to vector<8x8xf32>
    %74 = arith.subf %70, %73 : vector<8x8xf32>
    %75 = math.exp %74 : vector<8x8xf32>
    %cst_30 = arith.constant dense<0.000000e+00> : vector<8xf32>
    %76 = vector.multi_reduction <add>, %75, %cst_30 [1] : vector<8x8xf32> to vector<8xf32>
    %77 = vector.shape_cast %76 : vector<8xf32> to vector<8x1xf32>
    %78 = tpu.reciprocal %77 {approx = true} : vector<8x1xf32> -> vector<8x1xf32>
    %79 = vector.broadcast %78 : vector<8x1xf32> to vector<8x8xf32>
    %80 = arith.mulf %75, %79 : vector<8x8xf32>
    %81 = vector.extract_strided_slice %10 {offsets = [0, 24], sizes = [8, 8], strides = [1, 1]} : vector<8x32xf32> to vector<8x8xf32>
    %cst_31 = arith.constant dense<0.000000e+00> : vector<8x8xf32>
    %82 = tpu.matmul %80, %81, %cst_31 {dimension_numbers = #tpu.dot_dimension_numbers<[1], [0], [0], [1], [0, 0, 1, 1], [], []>} : vector<8x8xf32>, vector<8x8xf32>, vector<8x8xf32> -> vector<8x8xf32>
    %c0_32 = arith.constant 0 : index
    %c24 = arith.constant 24 : index
    %83 = vector.load %arg13[%c0_32, %c24] : memref<8x32xf32, #tpu.memory_space<vmem>>, vector<8x8xf32>
    tpu.vector_store %arg13[%c0_32, %c24], %82 {strides = array<i32>} : memref<8x32xf32, #tpu.memory_space<vmem>>, vector<8x8xf32>,
    %c0_33 = arith.constant 0 : index
    %c0_34 = arith.constant 0 : index
    %84 = vector.load %arg13[%c0_33, %c0_34] : memref<8x32xf32, #tpu.memory_space<vmem>>, vector<8x32xf32>
    %c0_35 = arith.constant 0 : index
    %c0_36 = arith.constant 0 : index
    %c0_37 = arith.constant 0 : index
    %85 = vector.load %arg4[%c0_35, %c0_36, %c0_37] : memref<3x32x32xf32, #tpu.memory_space<vmem>>, vector<1x32x32xf32>
    %86 = vector.shape_cast %85 : vector<1x32x32xf32> to vector<32x32xf32>
    %cst_38 = arith.constant dense<0.000000e+00> : vector<8x32xf32>
    %87 = tpu.matmul %84, %86, %cst_38 {dimension_numbers = #tpu.dot_dimension_numbers<[1], [0], [0], [1], [0, 0, 1, 1], [], []>} : vector<8x32xf32>, vector<32x32xf32>, vector<8x32xf32> -> vector<8x32xf32>
    %88 = vector.extract_strided_slice %2 {offsets = [0, 0], sizes = [1, 32], strides = [1, 1]} : vector<10x32xf32> to vector<1x32xf32>
    %89 = vector.broadcast %88 : vector<1x32xf32> to vector<8x32xf32>
    %90 = arith.addf %87, %89 : vector<8x32xf32>
    %91 = arith.addf %1, %90 : vector<8x32xf32>
    %92 = vector.extract_strided_slice %2 {offsets = [4, 0], sizes = [1, 32], strides = [1, 1]} : vector<10x32xf32> to vector<1x32xf32>
    %93 = vector.extract_strided_slice %2 {offsets = [5, 0], sizes = [1, 32], strides = [1, 1]} : vector<10x32xf32> to vector<1x32xf32>
    %cst_39 = arith.constant dense<0.000000e+00> : vector<8xf32>
    %94 = vector.multi_reduction <add>, %91, %cst_39 [1] : vector<8x32xf32> to vector<8xf32>
    %95 = vector.shape_cast %94 : vector<8xf32> to vector<8x1xf32>
    %cst_40 = arith.constant 3.200000e+01 : f32
    %96 = vector.broadcast %cst_40 : f32 to vector<8x1xf32>
    %97 = arith.divf %95, %96 : vector<8x1xf32>
    %98 = vector.broadcast %97 : vector<8x1xf32> to vector<8x32xf32>
    %99 = arith.subf %91, %98 : vector<8x32xf32>
    %100 = arith.mulf %99, %99 : vector<8x32xf32>
    %cst_41 = arith.constant dense<0.000000e+00> : vector<8xf32>
    %101 = vector.multi_reduction <add>, %100, %cst_41 [1] : vector<8x32xf32> to vector<8xf32>
    %102 = vector.shape_cast %101 : vector<8xf32> to vector<8x1xf32>
    %cst_42 = arith.constant 3.200000e+01 : f32
    %103 = vector.broadcast %cst_42 : f32 to vector<8x1xf32>
    %104 = arith.divf %102, %103 : vector<8x1xf32>
    %105 = vector.broadcast %97 : vector<8x1xf32> to vector<8x32xf32>
    %106 = arith.subf %91, %105 : vector<8x32xf32>
    %cst_43 = arith.constant 9.99999974E-6 : f32
    %107 = vector.broadcast %cst_43 : f32 to vector<8x1xf32>
    %108 = arith.addf %104, %107 : vector<8x1xf32>
    %109 = math.rsqrt %108 : vector<8x1xf32>
    %110 = vector.broadcast %109 : vector<8x1xf32> to vector<8x32xf32>
    %111 = arith.mulf %106, %110 : vector<8x32xf32>
    %112 = vector.broadcast %92 : vector<1x32xf32> to vector<8x32xf32>
    %113 = arith.mulf %111, %112 : vector<8x32xf32>
    %114 = vector.broadcast %93 : vector<1x32xf32> to vector<8x32xf32>
    %115 = arith.addf %113, %114 : vector<8x32xf32>
    %c0_44 = arith.constant 0 : index
    %c0_45 = arith.constant 0 : index
    %116 = vector.load %arg10[%c0_44, %c0_45] : memref<4x32xf32, #tpu.memory_space<vmem>>, vector<4x32xf32>
    %c1 = arith.constant 1 : index
    %c0_46 = arith.constant 0 : index
    %c0_47 = arith.constant 0 : index
    %117 = vector.load %arg4[%c1, %c0_46, %c0_47] : memref<3x32x32xf32, #tpu.memory_space<vmem>>, vector<1x32x32xf32>
    %118 = vector.shape_cast %117 : vector<1x32x32xf32> to vector<32x32xf32>
    %cst_48 = arith.constant dense<0.000000e+00> : vector<8x32xf32>
    %119 = tpu.matmul %115, %118, %cst_48 {dimension_numbers = #tpu.dot_dimension_numbers<[1], [0], [0], [1], [0, 0, 1, 1], [], []>} : vector<8x32xf32>, vector<32x32xf32>, vector<8x32xf32> -> vector<8x32xf32>
    %120 = vector.extract_strided_slice %2 {offsets = [1, 0], sizes = [1, 32], strides = [1, 1]} : vector<10x32xf32> to vector<1x32xf32>
    %121 = vector.broadcast %120 : vector<1x32xf32> to vector<8x32xf32>
    %122 = arith.addf %119, %121 : vector<8x32xf32>
    %c0_49 = arith.constant 0 : index
    %c0_50 = arith.constant 0 : index
    %123 = vector.load %arg5[%c0_49, %c0_50] : memref<32x64xf32, #tpu.memory_space<vmem>>, vector<32x64xf32>
    %cst_51 = arith.constant dense<0.000000e+00> : vector<4x64xf32>
    %124 = tpu.matmul %116, %123, %cst_51 {dimension_numbers = #tpu.dot_dimension_numbers<[1], [0], [0], [1], [0, 0, 1, 1], [], []>} : vector<4x32xf32>, vector<32x64xf32>, vector<4x64xf32> -> vector<4x64xf32>
    %c0_52 = arith.constant 0 : index
    %c0_53 = arith.constant 0 : index
    %125 = vector.load %arg6[%c0_52, %c0_53] : memref<1x64xf32, #tpu.memory_space<vmem>>, vector<1x64xf32>
    %126 = vector.broadcast %125 : vector<1x64xf32> to vector<4x64xf32>
    %127 = arith.addf %124, %126 : vector<4x64xf32>
    %128 = vector.extract_strided_slice %127 {offsets = [0, 0], sizes = [4, 32], strides = [1, 1]} : vector<4x64xf32> to vector<4x32xf32>
    %129 = vector.extract_strided_slice %127 {offsets = [0, 32], sizes = [4, 32], strides = [1, 1]} : vector<4x64xf32> to vector<4x32xf32>
    %130 = tpu.transpose %128, [1, 0] : vector<4x32xf32> -> vector<32x4xf32>
    %131 = vector.extract_strided_slice %122 {offsets = [0, 0], sizes = [8, 16], strides = [1, 1]} : vector<8x32xf32> to vector<8x16xf32>
    %132 = vector.extract_strided_slice %130 {offsets = [0, 0], sizes = [16, 4], strides = [1, 1]} : vector<32x4xf32> to vector<16x4xf32>
    %cst_54 = arith.constant dense<0.000000e+00> : vector<8x4xf32>
    %133 = tpu.matmul %131, %132, %cst_54 {dimension_numbers = #tpu.dot_dimension_numbers<[1], [0], [0], [1], [0, 0, 1, 1], [], []>} : vector<8x16xf32>, vector<16x4xf32>, vector<8x4xf32> -> vector<8x4xf32>
    %cst_55 = arith.constant 2.500000e-01 : f32
    %134 = vector.broadcast %cst_55 : f32 to vector<8x4xf32>
    %135 = arith.mulf %133, %134 : vector<8x4xf32>
    %cst_56 = arith.constant dense<0xFF800000> : vector<8xf32>
    %136 = vector.multi_reduction <maximumf>, %135, %cst_56 [1] : vector<8x4xf32> to vector<8xf32>
    %137 = vector.shape_cast %136 : vector<8xf32> to vector<8x1xf32>
    %138 = vector.broadcast %137 : vector<8x1xf32> to vector<8x4xf32>
    %139 = arith.subf %135, %138 : vector<8x4xf32>
    %140 = math.exp %139 : vector<8x4xf32>
    %cst_57 = arith.constant dense<0.000000e+00> : vector<8xf32>
    %141 = vector.multi_reduction <add>, %140, %cst_57 [1] : vector<8x4xf32> to vector<8xf32>
    %142 = vector.shape_cast %141 : vector<8xf32> to vector<8x1xf32>
    %143 = tpu.reciprocal %142 {approx = true} : vector<8x1xf32> -> vector<8x1xf32>
    %144 = vector.broadcast %143 : vector<8x1xf32> to vector<8x4xf32>
    %145 = arith.mulf %140, %144 : vector<8x4xf32>
    %146 = vector.extract_strided_slice %129 {offsets = [0, 0], sizes = [4, 16], strides = [1, 1]} : vector<4x32xf32> to vector<4x16xf32>
    %cst_58 = arith.constant dense<0.000000e+00> : vector<8x16xf32>
    %147 = tpu.matmul %145, %146, %cst_58 {dimension_numbers = #tpu.dot_dimension_numbers<[1], [0], [0], [1], [0, 0, 1, 1], [], []>} : vector<8x4xf32>, vector<4x16xf32>, vector<8x16xf32> -> vector<8x16xf32>
    %c0_59 = arith.constant 0 : index
    %c0_60 = arith.constant 0 : index
    %148 = vector.load %arg13[%c0_59, %c0_60] : memref<8x32xf32, #tpu.memory_space<vmem>>, vector<8x16xf32>
    tpu.vector_store %arg13[%c0_59, %c0_60], %147 {strides = array<i32>} : memref<8x32xf32, #tpu.memory_space<vmem>>, vector<8x16xf32>,
    %149 = vector.extract_strided_slice %122 {offsets = [0, 16], sizes = [8, 16], strides = [1, 1]} : vector<8x32xf32> to vector<8x16xf32>
    %150 = vector.extract_strided_slice %130 {offsets = [16, 0], sizes = [16, 4], strides = [1, 1]} : vector<32x4xf32> to vector<16x4xf32>
    %cst_61 = arith.constant dense<0.000000e+00> : vector<8x4xf32>
    %151 = tpu.matmul %149, %150, %cst_61 {dimension_numbers = #tpu.dot_dimension_numbers<[1], [0], [0], [1], [0, 0, 1, 1], [], []>} : vector<8x16xf32>, vector<16x4xf32>, vector<8x4xf32> -> vector<8x4xf32>
    %cst_62 = arith.constant 2.500000e-01 : f32
    %152 = vector.broadcast %cst_62 : f32 to vector<8x4xf32>
    %153 = arith.mulf %151, %152 : vector<8x4xf32>
    %cst_63 = arith.constant dense<0xFF800000> : vector<8xf32>
    %154 = vector.multi_reduction <maximumf>, %153, %cst_63 [1] : vector<8x4xf32> to vector<8xf32>
    %155 = vector.shape_cast %154 : vector<8xf32> to vector<8x1xf32>
    %156 = vector.broadcast %155 : vector<8x1xf32> to vector<8x4xf32>
    %157 = arith.subf %153, %156 : vector<8x4xf32>
    %158 = math.exp %157 : vector<8x4xf32>
    %cst_64 = arith.constant dense<0.000000e+00> : vector<8xf32>
    %159 = vector.multi_reduction <add>, %158, %cst_64 [1] : vector<8x4xf32> to vector<8xf32>
    %160 = vector.shape_cast %159 : vector<8xf32> to vector<8x1xf32>
    %161 = tpu.reciprocal %160 {approx = true} : vector<8x1xf32> -> vector<8x1xf32>
    %162 = vector.broadcast %161 : vector<8x1xf32> to vector<8x4xf32>
    %163 = arith.mulf %158, %162 : vector<8x4xf32>
    %164 = vector.extract_strided_slice %129 {offsets = [0, 16], sizes = [4, 16], strides = [1, 1]} : vector<4x32xf32> to vector<4x16xf32>
    %cst_65 = arith.constant dense<0.000000e+00> : vector<8x16xf32>
    %165 = tpu.matmul %163, %164, %cst_65 {dimension_numbers = #tpu.dot_dimension_numbers<[1], [0], [0], [1], [0, 0, 1, 1], [], []>} : vector<8x4xf32>, vector<4x16xf32>, vector<8x16xf32> -> vector<8x16xf32>
    %c0_66 = arith.constant 0 : index
    %c16_67 = arith.constant 16 : index
    %166 = vector.load %arg13[%c0_66, %c16_67] : memref<8x32xf32, #tpu.memory_space<vmem>>, vector<8x16xf32>
    tpu.vector_store %arg13[%c0_66, %c16_67], %165 {strides = array<i32>} : memref<8x32xf32, #tpu.memory_space<vmem>>, vector<8x16xf32>,
    %c0_68 = arith.constant 0 : index
    %c0_69 = arith.constant 0 : index
    %167 = vector.load %arg13[%c0_68, %c0_69] : memref<8x32xf32, #tpu.memory_space<vmem>>, vector<8x32xf32>
    %c2 = arith.constant 2 : index
    %c0_70 = arith.constant 0 : index
    %c0_71 = arith.constant 0 : index
    %168 = vector.load %arg4[%c2, %c0_70, %c0_71] : memref<3x32x32xf32, #tpu.memory_space<vmem>>, vector<1x32x32xf32>
    %169 = vector.shape_cast %168 : vector<1x32x32xf32> to vector<32x32xf32>
    %cst_72 = arith.constant dense<0.000000e+00> : vector<8x32xf32>
    %170 = tpu.matmul %167, %169, %cst_72 {dimension_numbers = #tpu.dot_dimension_numbers<[1], [0], [0], [1], [0, 0, 1, 1], [], []>} : vector<8x32xf32>, vector<32x32xf32>, vector<8x32xf32> -> vector<8x32xf32>
    %171 = vector.extract_strided_slice %2 {offsets = [2, 0], sizes = [1, 32], strides = [1, 1]} : vector<10x32xf32> to vector<1x32xf32>
    %172 = vector.broadcast %171 : vector<1x32xf32> to vector<8x32xf32>
    %173 = arith.addf %170, %172 : vector<8x32xf32>
    %174 = arith.addf %115, %173 : vector<8x32xf32>
    %175 = vector.extract_strided_slice %2 {offsets = [6, 0], sizes = [1, 32], strides = [1, 1]} : vector<10x32xf32> to vector<1x32xf32>
    %176 = vector.extract_strided_slice %2 {offsets = [7, 0], sizes = [1, 32], strides = [1, 1]} : vector<10x32xf32> to vector<1x32xf32>
    %cst_73 = arith.constant dense<0.000000e+00> : vector<8xf32>
    %177 = vector.multi_reduction <add>, %174, %cst_73 [1] : vector<8x32xf32> to vector<8xf32>
    %178 = vector.shape_cast %177 : vector<8xf32> to vector<8x1xf32>
    %cst_74 = arith.constant 3.200000e+01 : f32
    %179 = vector.broadcast %cst_74 : f32 to vector<8x1xf32>
    %180 = arith.divf %178, %179 : vector<8x1xf32>
    %181 = vector.broadcast %180 : vector<8x1xf32> to vector<8x32xf32>
    %182 = arith.subf %174, %181 : vector<8x32xf32>
    %183 = arith.mulf %182, %182 : vector<8x32xf32>
    %cst_75 = arith.constant dense<0.000000e+00> : vector<8xf32>
    %184 = vector.multi_reduction <add>, %183, %cst_75 [1] : vector<8x32xf32> to vector<8xf32>
    %185 = vector.shape_cast %184 : vector<8xf32> to vector<8x1xf32>
    %cst_76 = arith.constant 3.200000e+01 : f32
    %186 = vector.broadcast %cst_76 : f32 to vector<8x1xf32>
    %187 = arith.divf %185, %186 : vector<8x1xf32>
    %188 = vector.broadcast %180 : vector<8x1xf32> to vector<8x32xf32>
    %189 = arith.subf %174, %188 : vector<8x32xf32>
    %cst_77 = arith.constant 9.99999974E-6 : f32
    %190 = vector.broadcast %cst_77 : f32 to vector<8x1xf32>
    %191 = arith.addf %187, %190 : vector<8x1xf32>
    %192 = math.rsqrt %191 : vector<8x1xf32>
    %193 = vector.broadcast %192 : vector<8x1xf32> to vector<8x32xf32>
    %194 = arith.mulf %189, %193 : vector<8x32xf32>
    %195 = vector.broadcast %175 : vector<1x32xf32> to vector<8x32xf32>
    %196 = arith.mulf %194, %195 : vector<8x32xf32>
    %197 = vector.broadcast %176 : vector<1x32xf32> to vector<8x32xf32>
    %198 = arith.addf %196, %197 : vector<8x32xf32>
    %c0_78 = arith.constant 0 : index
    %c0_79 = arith.constant 0 : index
    %199 = vector.load %arg7[%c0_78, %c0_79] : memref<32x64xf32, #tpu.memory_space<vmem>>, vector<32x64xf32>
    %cst_80 = arith.constant dense<0.000000e+00> : vector<8x64xf32>
    %200 = tpu.matmul %198, %199, %cst_80 {dimension_numbers = #tpu.dot_dimension_numbers<[1], [0], [0], [1], [0, 0, 1, 1], [], []>} : vector<8x32xf32>, vector<32x64xf32>, vector<8x64xf32> -> vector<8x64xf32>
    %c0_81 = arith.constant 0 : index
    %c0_82 = arith.constant 0 : index
    %201 = vector.load %arg8[%c0_81, %c0_82] : memref<1x64xf32, #tpu.memory_space<vmem>>, vector<1x64xf32>
    %202 = vector.broadcast %201 : vector<1x64xf32> to vector<8x64xf32>
    %203 = arith.addf %200, %202 : vector<8x64xf32>
    %cst_83 = arith.constant 5.000000e-01 : f32
    %204 = vector.broadcast %cst_83 : f32 to vector<8x64xf32>
    %205 = arith.mulf %204, %203 : vector<8x64xf32>
    %206 = arith.mulf %203, %203 : vector<8x64xf32>
    %207 = arith.mulf %206, %203 : vector<8x64xf32>
    %cst_84 = arith.constant 4.471500e-02 : f32
    %208 = vector.broadcast %cst_84 : f32 to vector<8x64xf32>
    %209 = arith.mulf %208, %207 : vector<8x64xf32>
    %210 = arith.addf %203, %209 : vector<8x64xf32>
    %cst_85 = arith.constant 0.797884583 : f32
    %211 = vector.broadcast %cst_85 : f32 to vector<8x64xf32>
    %212 = arith.mulf %211, %210 : vector<8x64xf32>
    %213 = math.tanh %212 : vector<8x64xf32>
    %cst_86 = arith.constant 1.000000e+00 : f32
    %214 = vector.broadcast %cst_86 : f32 to vector<8x64xf32>
    %215 = arith.addf %214, %213 : vector<8x64xf32>
    %216 = arith.mulf %205, %215 : vector<8x64xf32>
    %c0_87 = arith.constant 0 : index
    %c0_88 = arith.constant 0 : index
    %217 = vector.load %arg9[%c0_87, %c0_88] : memref<64x32xf32, #tpu.memory_space<vmem>>, vector<64x32xf32>
    %cst_89 = arith.constant dense<0.000000e+00> : vector<8x32xf32>
    %218 = tpu.matmul %216, %217, %cst_89 {dimension_numbers = #tpu.dot_dimension_numbers<[1], [0], [0], [1], [0, 0, 1, 1], [], []>} : vector<8x64xf32>, vector<64x32xf32>, vector<8x32xf32> -> vector<8x32xf32>
    %219 = vector.extract_strided_slice %2 {offsets = [3, 0], sizes = [1, 32], strides = [1, 1]} : vector<10x32xf32> to vector<1x32xf32>
    %220 = vector.broadcast %219 : vector<1x32xf32> to vector<8x32xf32>
    %221 = arith.addf %218, %220 : vector<8x32xf32>
    %222 = arith.addf %198, %221 : vector<8x32xf32>
    %223 = vector.extract_strided_slice %2 {offsets = [8, 0], sizes = [1, 32], strides = [1, 1]} : vector<10x32xf32> to vector<1x32xf32>
    %224 = vector.extract_strided_slice %2 {offsets = [9, 0], sizes = [1, 32], strides = [1, 1]} : vector<10x32xf32> to vector<1x32xf32>
    %cst_90 = arith.constant dense<0.000000e+00> : vector<8xf32>
    %225 = vector.multi_reduction <add>, %222, %cst_90 [1] : vector<8x32xf32> to vector<8xf32>
    %226 = vector.shape_cast %225 : vector<8xf32> to vector<8x1xf32>
    %cst_91 = arith.constant 3.200000e+01 : f32
    %227 = vector.broadcast %cst_91 : f32 to vector<8x1xf32>
    %228 = arith.divf %226, %227 : vector<8x1xf32>
    %229 = vector.broadcast %228 : vector<8x1xf32> to vector<8x32xf32>
    %230 = arith.subf %222, %229 : vector<8x32xf32>
    %231 = arith.mulf %230, %230 : vector<8x32xf32>
    %cst_92 = arith.constant dense<0.000000e+00> : vector<8xf32>
    %232 = vector.multi_reduction <add>, %231, %cst_92 [1] : vector<8x32xf32> to vector<8xf32>
    %233 = vector.shape_cast %232 : vector<8xf32> to vector<8x1xf32>
    %cst_93 = arith.constant 3.200000e+01 : f32
    %234 = vector.broadcast %cst_93 : f32 to vector<8x1xf32>
    %235 = arith.divf %233, %234 : vector<8x1xf32>
    %236 = vector.broadcast %228 : vector<8x1xf32> to vector<8x32xf32>
    %237 = arith.subf %222, %236 : vector<8x32xf32>
    %cst_94 = arith.constant 9.99999974E-6 : f32
    %238 = vector.broadcast %cst_94 : f32 to vector<8x1xf32>
    %239 = arith.addf %235, %238 : vector<8x1xf32>
    %240 = math.rsqrt %239 : vector<8x1xf32>
    %241 = vector.broadcast %240 : vector<8x1xf32> to vector<8x32xf32>
    %242 = arith.mulf %237, %241 : vector<8x32xf32>
    %243 = vector.broadcast %223 : vector<1x32xf32> to vector<8x32xf32>
    %244 = arith.mulf %242, %243 : vector<8x32xf32>
    %245 = vector.broadcast %224 : vector<1x32xf32> to vector<8x32xf32>
    %246 = arith.addf %244, %245 : vector<8x32xf32>
    %c0_95 = arith.constant 0 : index
    %c0_96 = arith.constant 0 : index
    %c0_97 = arith.constant 0 : index
    %247 = vector.load %arg12[%c0_95, %c0_96, %c0_97] : memref<1x8x32xf32, #tpu.memory_space<vmem>>, vector<1x8x32xf32>
    %248 = vector.shape_cast %247 : vector<1x8x32xf32> to vector<8x32xf32>
    %249 = vector.shape_cast %246 : vector<8x32xf32> to vector<1x8x32xf32>
    tpu.vector_store %arg12[%c0_95, %c0_96, %c0_97], %249 {strides = array<i32>} : memref<1x8x32xf32, #tpu.memory_space<vmem>>, vector<1x8x32xf32>,
    return
  }
  func.func @transform_0(%arg0: i32) -> (i32, i32, i32) {
    %c0_i32 = arith.constant 0 : i32
    %c0_i32_0 = arith.constant 0 : i32
    %c0_i32_1 = arith.constant 0 : i32
    return %arg0, %c0_i32, %c0_i32_0 : i32, i32, i32
  }
  func.func @transform_1(%arg0: i32) -> (i32, i32) {
    %c0_i32 = arith.constant 0 : i32
    %c0_i32_0 = arith.constant 0 : i32
    %c0_i32_1 = arith.constant 0 : i32
    return %c0_i32, %c0_i32_0 : i32, i32
  }
  func.func @transform_2(%arg0: i32) -> (i32, i32) {
    %c0_i32 = arith.constant 0 : i32
    %c0_i32_0 = arith.constant 0 : i32
    %c0_i32_1 = arith.constant 0 : i32
    return %c0_i32, %c0_i32_0 : i32, i32
  }
  func.func @transform_3(%arg0: i32) -> (i32, i32, i32) {
    %c0_i32 = arith.constant 0 : i32
    %c0_i32_0 = arith.constant 0 : i32
    %c0_i32_1 = arith.constant 0 : i32
    %c0_i32_2 = arith.constant 0 : i32
    return %c0_i32, %c0_i32_0, %c0_i32_1 : i32, i32, i32
  }
  func.func @transform_4(%arg0: i32) -> (i32, i32) {
    %c0_i32 = arith.constant 0 : i32
    %c0_i32_0 = arith.constant 0 : i32
    %c0_i32_1 = arith.constant 0 : i32
    return %c0_i32, %c0_i32_0 : i32, i32
  }
  func.func @transform_5(%arg0: i32) -> (i32, i32) {
    %c0_i32 = arith.constant 0 : i32
    %c0_i32_0 = arith.constant 0 : i32
    %c0_i32_1 = arith.constant 0 : i32
    return %c0_i32, %c0_i32_0 : i32, i32
  }
  func.func @transform_6(%arg0: i32) -> (i32, i32) {
    %c0_i32 = arith.constant 0 : i32
    %c0_i32_0 = arith.constant 0 : i32
    %c0_i32_1 = arith.constant 0 : i32
    return %c0_i32, %c0_i32_0 : i32, i32
  }
  func.func @transform_7(%arg0: i32) -> (i32, i32) {
    %c0_i32 = arith.constant 0 : i32
    %c0_i32_0 = arith.constant 0 : i32
    %c0_i32_1 = arith.constant 0 : i32
    return %c0_i32, %c0_i32_0 : i32, i32
  }
  func.func @transform_8(%arg0: i32) -> (i32, i32) {
    %c0_i32 = arith.constant 0 : i32
    %c0_i32_0 = arith.constant 0 : i32
    %c0_i32_1 = arith.constant 0 : i32
    return %c0_i32, %c0_i32_0 : i32, i32
  }
  func.func @transform_9(%arg0: i32) -> (i32, i32) {
    %c0_i32 = arith.constant 0 : i32
    %c0_i32_0 = arith.constant 0 : i32
    %c0_i32_1 = arith.constant 0 : i32
    return %c0_i32, %c0_i32_0 : i32, i32
  }
  func.func @transform_10(%arg0: i32) -> (i32, i32) {
    %c0_i32 = arith.constant 0 : i32
    %c0_i32_0 = arith.constant 0 : i32
    %c0_i32_1 = arith.constant 0 : i32
    return %c0_i32, %c0_i32_0 : i32, i32
  }
  func.func @transform_11(%arg0: i32) -> (i32, i32, i32) {
    %c0_i32 = arith.constant 0 : i32
    %c0_i32_0 = arith.constant 0 : i32
    %c0_i32_1 = arith.constant 0 : i32
    return %arg0, %c0_i32, %c0_i32_0 : i32, i32, i32
  }
}

</mosaic_0001>

<llo_original>
// kernel: eeg_transformer_block.1
$region0: #{eeg_transformer_block.1}
  #allocation0 [shape = 'u32[]', space=smem, size = 0x4, offset = 0x4, fixed_abs, tag = 'smem constant byte address 0x4 - core index']
  #allocation1 [shape = 'u32[144,128]{1,0:T(1,128)}', space=vmem, size = 0x12000, scoped, tag = 'internal scratch']
  #allocation2 [shape = 'f32[8,32]{1,0:T(8,128)}', space=vmem, size = 0x1000, scoped, tag = 'scratch operand']
  %s0 = inlined_call_operand.vmem [shape: f32[2,8,32], index: 0, kind: input, shape index: {}]
  %s1 = inlined_call_operand.vmem [shape: f32[32,96], index: 1, kind: input, shape index: {}]
  %s2 = inlined_call_operand.vmem [shape: f32[1,96], index: 2, kind: input, shape index: {}]
  %s3 = inlined_call_operand.vmem [shape: f32[3,32,32], index: 3, kind: input, shape index: {}]
  %s4 = inlined_call_operand.vmem [shape: f32[32,64], index: 4, kind: input, shape index: {}]
  %s5 = inlined_call_operand.vmem [shape: f32[1,64], index: 5, kind: input, shape index: {}]
  %s6 = inlined_call_operand.vmem [shape: f32[32,64], index: 6, kind: input, shape index: {}]
  %s7 = inlined_call_operand.vmem [shape: f32[1,64], index: 7, kind: input, shape index: {}]
  %s8 = inlined_call_operand.vmem [shape: f32[64,32], index: 8, kind: input, shape index: {}]
  %s9 = inlined_call_operand.vmem [shape: f32[4,32], index: 9, kind: input, shape index: {}]
  %s10 = inlined_call_operand.vmem [shape: f32[10,32], index: 10, kind: input, shape index: {}]
  %s11 = inlined_call_operand.hbm [shape: f32[2,8,32], index: 11, kind: output, shape index: {}]
  %s12 = sld [smem:[#allocation0]]
  $region77: #{eeg_transformer_block.1} parent=0
    _
  %s14 = ssub.s32 1, %s12
  %s15 = scalar_select 0, %s14, %s12
  $region1: #{eeg_transformer_block.1} parent=0
    #allocation3 [shape = 'u8[8192]{0}', space=vmem, size = 0x2000, scoped, tag = 'output window, operand 0']
    #allocation4 [shape = 's32[2]{0}', space=sflag, size = 0x8, scoped, tag = 'scoped memory for eeg_transformer_block.1']
    %16 = vsyncpa [#allocation4], 0
    %s17 = scalar_lea.sflag [#allocation4], 1
    %18 = vsyncpa %s17, 0
    loop: start=0, step=1, limit=4
    $region2: #{eeg_transformer_block.1} parent=1 // loop_pre_header
      _
    $region3: #{eeg_transformer_block.1} parent=1 // loop_header
      %s20 = sphi 0, %s24
      %p21 = scmp.ge.s32.totalorder %s20, 4
      %s30 = sphi 0, %s32
      %s33 = sphi 0, %s30
      %s34 = sphi 0, %s33
      %s50 = sphi 0, %s34
      %s54 = sphi 0, %s54
      %s56 = sphi 0, %s54
      %s57 = sphi 0, %s56
      %s71 = sphi 0, %s57
      %s75 = sphi 0, %s75
      %s77 = sphi 0, %s75
      %s78 = sphi 0, %s77
      %s92 = sphi 0, %s78
      %s96 = sphi 0, %s96
      %s98 = sphi 0, %s96
      %s99 = sphi 0, %s98
      %s113 = sphi 0, %s99
      %s117 = sphi 0, %s117
      %s119 = sphi 0, %s117
      %s120 = sphi 0, %s119
      %s134 = sphi 0, %s120
      %s138 = sphi 0, %s138
      %s140 = sphi 0, %s138
      %s141 = sphi 0, %s140
      %s155 = sphi 0, %s141
      %s159 = sphi 0, %s159
      %s161 = sphi 0, %s159
      %s162 = sphi 0, %s161
      %s176 = sphi 0, %s162
      %s180 = sphi 0, %s180
      %s182 = sphi 0, %s180
      %s183 = sphi 0, %s182
      %s197 = sphi 0, %s183
      %s201 = sphi 0, %s201
      %s203 = sphi 0, %s201
      %s204 = sphi 0, %s203
      %s218 = sphi 0, %s204
      %s222 = sphi 0, %s222
      %s224 = sphi 0, %s222
      %s225 = sphi 0, %s224
      %s239 = sphi 0, %s225
      %s243 = sphi 0, %s243
      %s245 = sphi 0, %s243
      %s246 = sphi 0, %s245
      %s260 = sphi 0, %s246
      %s266 = sphi 0, %s268
      %s269 = sphi 0, %s266
      %s270 = sphi 0, %s269
      %s286 = sphi 0, %s270
    $region4: #{eeg_transformer_block.1} parent=1 // loop_header_branch
      %23 = sbr.rel (%p21) target = $region8
    $region5: #{eeg_transformer_block.1} parent=1 // loop_body
      %s25 = ssub.s32 %s20, 1
      %s26 = ssub.s32 %s20, 2
      %s27 = sadd.s32 %s20, 1
      %s28 = ssub.s32 %s20, %s27
      %p29 = scmp.eq.s32.totalorder %s28, 0
      %s31 = sadd.s32 %s30, 1
      %s32 = scalar_select %p29, %s30, %s31
      %p35 = pneg %p29
      %p36 = scmp.eq.s32.totalorder %s20, 1
      %p37 = por %p35, %p36
      %p38 = scmp.ne.s32.totalorder %s30, %s33
      %p39 = scmp.eq.s32.totalorder %s20, 0
      %p40 = por %p38, %p39
      %p41 = scmp.ne.s32.totalorder %s30, %s33
      %p42 = scmp.eq.s32.totalorder %s25, 1
      %p43 = por %p41, %p42
      %p44 = scmp.ne.s32.totalorder %s33, %s34
      %p45 = scmp.eq.s32.totalorder %s25, 0
      %p46 = por %p44, %p45
      %p47 = scmp.ne.s32.totalorder %s33, %s34
      %p48 = scmp.eq.s32.totalorder %s26, 1
      %p49 = por %p47, %p48
      %p51 = scmp.ne.s32.totalorder %s34, %s50
      %p52 = scmp.eq.s32.totalorder %s26, 0
      %p53 = por %p51, %p52
      %s55 = sadd.s32 %s54, 1
      %p58 = scmp.eq.s32.totalorder %s20, 1
      %p59 = scmp.ne.s32.totalorder %s54, %s56
      %p60 = scmp.eq.s32.totalorder %s20, 0
      %p61 = por %p59, %p60
      %p62 = scmp.ne.s32.totalorder %s54, %s56
      %p63 = scmp.eq.s32.totalorder %s25, 1
      %p64 = por %p62, %p63
      %p65 = scmp.ne.s32.totalorder %s56, %s57
      %p66 = scmp.eq.s32.totalorder %s25, 0
      %p67 = por %p65, %p66
      %p68 = scmp.ne.s32.totalorder %s56, %s57
      %p69 = scmp.eq.s32.totalorder %s26, 1
      %p70 = por %p68, %p69
      %p72 = scmp.ne.s32.totalorder %s57, %s71
      %p73 = scmp.eq.s32.totalorder %s26, 0
      %p74 = por %p72, %p73
      %s76 = sadd.s32 %s75, 1
      %p79 = scmp.eq.s32.totalorder %s20, 1
      %p80 = scmp.ne.s32.totalorder %s75, %s77
      %p81 = scmp.eq.s32.totalorder %s20, 0
      %p82 = por %p80, %p81
      %p83 = scmp.ne.s32.totalorder %s75, %s77
      %p84 = scmp.eq.s32.totalorder %s25, 1
      %p85 = por %p83, %p84
      %p86 = scmp.ne.s32.totalorder %s77, %s78
      %p87 = scmp.eq.s32.totalorder %s25, 0
      %p88 = por %p86, %p87
      %p89 = scmp.ne.s32.totalorder %s77, %s78
      %p90 = scmp.eq.s32.totalorder %s26, 1
      %p91 = por %p89, %p90
      %p93 = scmp.ne.s32.totalorder %s78, %s92
      %p94 = scmp.eq.s32.totalorder %s26, 0
      %p95 = por %p93, %p94
      %s97 = sadd.s32 %s96, 1
      %p100 = scmp.eq.s32.totalorder %s20, 1
      %p101 = scmp.ne.s32.totalorder %s96, %s98
      %p102 = scmp.eq.s32.totalorder %s20, 0
      %p103 = por %p101, %p102
      %p104 = scmp.ne.s32.totalorder %s96, %s98
      %p105 = scmp.eq.s32.totalorder %s25, 1
      %p106 = por %p104, %p105
      %p107 = scmp.ne.s32.totalorder %s98, %s99
      %p108 = scmp.eq.s32.totalorder %s25, 0
      %p109 = por %p107, %p108
      %p110 = scmp.ne.s32.totalorder %s98, %s99
      %p111 = scmp.eq.s32.totalorder %s26, 1
      %p112 = por %p110, %p111
      %p114 = scmp.ne.s32.totalorder %s99, %s113
      %p115 = scmp.eq.s32.totalorder %s26, 0
      %p116 = por %p114, %p115
      %s118 = sadd.s32 %s117, 1
      %p121 = scmp.eq.s32.totalorder %s20, 1
      %p122 = scmp.ne.s32.totalorder %s117, %s119
      %p123 = scmp.eq.s32.totalorder %s20, 0
      %p124 = por %p122, %p123
      %p125 = scmp.ne.s32.totalorder %s117, %s119
      %p126 = scmp.eq.s32.totalorder %s25, 1
      %p127 = por %p125, %p126
      %p128 = scmp.ne.s32.totalorder %s119, %s120
      %p129 = scmp.eq.s32.totalorder %s25, 0
      %p130 = por %p128, %p129
      %p131 = scmp.ne.s32.totalorder %s119, %s120
      %p132 = scmp.eq.s32.totalorder %s26, 1
      %p133 = por %p131, %p132
      %p135 = scmp.ne.s32.totalorder %s120, %s134
      %p136 = scmp.eq.s32.totalorder %s26, 0
      %p137 = por %p135, %p136
      %s139 = sadd.s32 %s138, 1
      %p142 = scmp.eq.s32.totalorder %s20, 1
      %p143 = scmp.ne.s32.totalorder %s138, %s140
      %p144 = scmp.eq.s32.totalorder %s20, 0
      %p145 = por %p143, %p144
      %p146 = scmp.ne.s32.totalorder %s138, %s140
      %p147 = scmp.eq.s32.totalorder %s25, 1
      %p148 = por %p146, %p147
      %p149 = scmp.ne.s32.totalorder %s140, %s141
      %p150 = scmp.eq.s32.totalorder %s25, 0
      %p151 = por %p149, %p150
      %p152 = scmp.ne.s32.totalorder %s140, %s141
      %p153 = scmp.eq.s32.totalorder %s26, 1
      %p154 = por %p152, %p153
      %p156 = scmp.ne.s32.totalorder %s141, %s155
      %p157 = scmp.eq.s32.totalorder %s26, 0
      %p158 = por %p156, %p157
      %s160 = sadd.s32 %s159, 1
      %p163 = scmp.eq.s32.totalorder %s20, 1
      %p164 = scmp.ne.s32.totalorder %s159, %s161
      %p165 = scmp.eq.s32.totalorder %s20, 0
      %p166 = por %p164, %p165
      %p167 = scmp.ne.s32.totalorder %s159, %s161
      %p168 = scmp.eq.s32.totalorder %s25, 1
      %p169 = por %p167, %p168
      %p170 = scmp.ne.s32.totalorder %s161, %s162
      %p171 = scmp.eq.s32.totalorder %s25, 0
      %p172 = por %p170, %p171
      %p173 = scmp.ne.s32.totalorder %s161, %s162
      %p174 = scmp.eq.s32.totalorder %s26, 1
      %p175 = por %p173, %p174
      %p177 = scmp.ne.s32.totalorder %s162, %s176
      %p178 = scmp.eq.s32.totalorder %s26, 0
      %p179 = por %p177, %p178
      %s181 = sadd.s32 %s180, 1
      %p184 = scmp.eq.s32.totalorder %s20, 1
      %p185 = scmp.ne.s32.totalorder %s180, %s182
      %p186 = scmp.eq.s32.totalorder %s20, 0
      %p187 = por %p185, %p186
      %p188 = scmp.ne.s32.totalorder %s180, %s182
      %p189 = scmp.eq.s32.totalorder %s25, 1
      %p190 = por %p188, %p189
      %p191 = scmp.ne.s32.totalorder %s182, %s183
      %p192 = scmp.eq.s32.totalorder %s25, 0
      %p193 = por %p191, %p192
      %p194 = scmp.ne.s32.totalorder %s182, %s183
      %p195 = scmp.eq.s32.totalorder %s26, 1
      %p196 = por %p194, %p195
      %p198 = scmp.ne.s32.totalorder %s183, %s197
      %p199 = scmp.eq.s32.totalorder %s26, 0
      %p200 = por %p198, %p199
      %s202 = sadd.s32 %s201, 1
      %p205 = scmp.eq.s32.totalorder %s20, 1
      %p206 = scmp.ne.s32.totalorder %s201, %s203
      %p207 = scmp.eq.s32.totalorder %s20, 0
      %p208 = por %p206, %p207
      %p209 = scmp.ne.s32.totalorder %s201, %s203
      %p210 = scmp.eq.s32.totalorder %s25, 1
      %p211 = por %p209, %p210
      %p212 = scmp.ne.s32.totalorder %s203, %s204
      %p213 = scmp.eq.s32.totalorder %s25, 0
      %p214 = por %p212, %p213
      %p215 = scmp.ne.s32.totalorder %s203, %s204
      %p216 = scmp.eq.s32.totalorder %s26, 1
      %p217 = por %p215, %p216
      %p219 = scmp.ne.s32.totalorder %s204, %s218
      %p220 = scmp.eq.s32.totalorder %s26, 0
      %p221 = por %p219, %p220
      %s223 = sadd.s32 %s222, 1
      %p226 = scmp.eq.s32.totalorder %s20, 1
      %p227 = scmp.ne.s32.totalorder %s222, %s224
      %p228 = scmp.eq.s32.totalorder %s20, 0
      %p229 = por %p227, %p228
      %p230 = scmp.ne.s32.totalorder %s222, %s224
      %p231 = scmp.eq.s32.totalorder %s25, 1
      %p232 = por %p230, %p231
      %p233 = scmp.ne.s32.totalorder %s224, %s225
      %p234 = scmp.eq.s32.totalorder %s25, 0
      %p235 = por %p233, %p234
      %p236 = scmp.ne.s32.totalorder %s224, %s225
      %p237 = scmp.eq.s32.totalorder %s26, 1
      %p238 = por %p236, %p237
      %p240 = scmp.ne.s32.totalorder %s225, %s239
      %p241 = scmp.eq.s32.totalorder %s26, 0
      %p242 = por %p240, %p241
      %s244 = sadd.s32 %s243, 1
      %p247 = scmp.eq.s32.totalorder %s20, 1
      %p248 = scmp.ne.s32.totalorder %s243, %s245
      %p249 = scmp.eq.s32.totalorder %s20, 0
      %p250 = por %p248, %p249
      %p251 = scmp.ne.s32.totalorder %s243, %s245
      %p252 = scmp.eq.s32.totalorder %s25, 1
      %p253 = por %p251, %p252
      %p254 = scmp.ne.s32.totalorder %s245, %s246
      %p255 = scmp.eq.s32.totalorder %s25, 0
      %p256 = por %p254, %p255
      %p257 = scmp.ne.s32.totalorder %s245, %s246
      %p258 = scmp.eq.s32.totalorder %s26, 1
      %p259 = por %p257, %p258
      %p261 = scmp.ne.s32.totalorder %s246, %s260
      %p262 = scmp.eq.s32.totalorder %s26, 0
      %p263 = por %p261, %p262
      %s264 = ssub.s32 %s20, %s27
      %p265 = scmp.eq.s32.totalorder %s264, 0
      %s267 = sadd.s32 %s266, 1
      %s268 = scalar_select %p265, %s266, %s267
      %p271 = pneg %p265
      %p272 = scmp.eq.s32.totalorder %s20, 1
      %p273 = por %p271, %p272
      %p274 = scmp.ne.s32.totalorder %s266, %s269
      %p275 = scmp.eq.s32.totalorder %s20, 0
      %p276 = por %p274, %p275
      %p277 = scmp.ne.s32.totalorder %s266, %s269
      %p278 = scmp.eq.s32.totalorder %s25, 1
      %p279 = por %p277, %p278
      %p280 = scmp.ne.s32.totalorder %s269, %s270
      %p281 = scmp.eq.s32.totalorder %s25, 0
      %p282 = por %p280, %p281
      %p283 = scmp.ne.s32.totalorder %s269, %s270
      %p284 = scmp.eq.s32.totalorder %s26, 1
      %p285 = por %p283, %p284
      %p287 = scmp.ne.s32.totalorder %s270, %s286
      %p288 = scmp.eq.s32.totalorder %s26, 0
      %p289 = por %p287, %p288
      %p290 = scmp.le.s32.totalorder 1, %s20
      %p291 = scmp.lt.s32.totalorder %s20, 3
      %p292 = pnand %p290, %p291
      %p293 = pneg %p292
      // Predicated region
      $region9: #{eeg_transformer_block.1} parent=5 // pred_check
        _
      $region10: #{eeg_transformer_block.1} parent=5 // pred_check_branch
        %295 = sbr.rel (%p292) target = $region12
      $region11: #{eeg_transformer_block.1} parent=5 // pred_region
        %s296 = ssub.s32 %s20, 1
        // Predicated region
        $region13: #{eeg_transformer_block.1} parent=11 // pred_check
          %p297 = pneg %p67
        $region14: #{eeg_transformer_block.1} parent=11 // pred_check_branch
          %299 = sbr.rel (%p297) target = $region16
        $region15: #{eeg_transformer_block.1} parent=11 // pred_region
          _
        $region16: #{eeg_transformer_block.1} parent=11 // pred_fallthru
          _
        // Predicated region
        $region17: #{eeg_transformer_block.1} parent=11 // pred_check
          %p300 = pneg %p88
        $region18: #{eeg_transformer_block.1} parent=11 // pred_check_branch
          %302 = sbr.rel (%p300) target = $region20
        $region19: #{eeg_transformer_block.1} parent=11 // pred_region
          _
        $region20: #{eeg_transformer_block.1} parent=11 // pred_fallthru
          _
        // Predicated region
        $region21: #{eeg_transformer_block.1} parent=11 // pred_check
          %p303 = pneg %p109
        $region22: #{eeg_transformer_block.1} parent=11 // pred_check_branch
          %305 = sbr.rel (%p303) target = $region24
        $region23: #{eeg_transformer_block.1} parent=11 // pred_region
          _
        $region24: #{eeg_transformer_block.1} parent=11 // pred_fallthru
          _
        // Predicated region
        $region25: #{eeg_transformer_block.1} parent=11 // pred_check
          %p306 = pneg %p130
        $region26: #{eeg_transformer_block.1} parent=11 // pred_check_branch
          %308 = sbr.rel (%p306) target = $region28
        $region27: #{eeg_transformer_block.1} parent=11 // pred_region
          _
        $region28: #{eeg_transformer_block.1} parent=11 // pred_fallthru
          _
        // Predicated region
        $region29: #{eeg_transformer_block.1} parent=11 // pred_check
          %p309 = pneg %p151
        $region30: #{eeg_transformer_block.1} parent=11 // pred_check_branch
          %311 = sbr.rel (%p309) target = $region32
        $region31: #{eeg_transformer_block.1} parent=11 // pred_region
          _
        $region32: #{eeg_transformer_block.1} parent=11 // pred_fallthru
          _
        // Predicated region
        $region33: #{eeg_transformer_block.1} parent=11 // pred_check
          %p312 = pneg %p172
        $region34: #{eeg_transformer_block.1} parent=11 // pred_check_branch
          %314 = sbr.rel (%p312) target = $region36
        $region35: #{eeg_transformer_block.1} parent=11 // pred_region
          _
        $region36: #{eeg_transformer_block.1} parent=11 // pred_fallthru
          _
        // Predicated region
        $region37: #{eeg_transformer_block.1} parent=11 // pred_check
          %p315 = pneg %p193
        $region38: #{eeg_transformer_block.1} parent=11 // pred_check_branch
          %317 = sbr.rel (%p315) target = $region40
        $region39: #{eeg_transformer_block.1} parent=11 // pred_region
          _
        $region40: #{eeg_transformer_block.1} parent=11 // pred_fallthru
          _
        // Predicated region
        $region41: #{eeg_transformer_block.1} parent=11 // pred_check
          %p318 = pneg %p214
        $region42: #{eeg_transformer_block.1} parent=11 // pred_check_branch
          %320 = sbr.rel (%p318) target = $region44
        $region43: #{eeg_transformer_block.1} parent=11 // pred_region
          _
        $region44: #{eeg_transformer_block.1} parent=11 // pred_fallthru
          _
        // Predicated region
        $region45: #{eeg_transformer_block.1} parent=11 // pred_check
          %p321 = pneg %p235
        $region46: #{eeg_transformer_block.1} parent=11 // pred_check_branch
          %323 = sbr.rel (%p321) target = $region48
        $region47: #{eeg_transformer_block.1} parent=11 // pred_region
          _
        $region48: #{eeg_transformer_block.1} parent=11 // pred_fallthru
          _
        // Predicated region
        $region49: #{eeg_transformer_block.1} parent=11 // pred_check
          %p324 = pneg %p256
        $region50: #{eeg_transformer_block.1} parent=11 // pred_check_branch
          %326 = sbr.rel (%p324) target = $region52
        $region51: #{eeg_transformer_block.1} parent=11 // pred_region
          _
        $region52: #{eeg_transformer_block.1} parent=11 // pred_fallthru
          _
      $region12: #{eeg_transformer_block.1} parent=5 // pred_fallthru
        _
      %p327 = scmp.lt.s32.totalorder %s20, 2
      // Predicated region
      $region53: #{eeg_transformer_block.1} parent=5 // pred_check
        %p328 = pneg %p327
      $region54: #{eeg_transformer_block.1} parent=5 // pred_check_branch
        %330 = sbr.rel (%p328) target = $region56
      $region55: #{eeg_transformer_block.1} parent=5 // pred_region
        // Predicated region
        $region57: #{eeg_transformer_block.1} parent=55 // pred_check
          %p331 = pneg %p40
        $region58: #{eeg_transformer_block.1} parent=55 // pred_check_branch
          %333 = sbr.rel (%p331) target = $region60
        $region59: #{eeg_transformer_block.1} parent=55 // pred_region
          %p334 = scmp.lt.s32.totalorder %s20, 1
          %s335 = scalar_select %p334, %s20, 1
          %s336 = smul.addr %s335, 8
          %s337 = scalar_lea.vmem %s0, %s336
        $region60: #{eeg_transformer_block.1} parent=55 // pred_fallthru
          _
      $region56: #{eeg_transformer_block.1} parent=5 // pred_fallthru
        _
      %p338 = scmp.le.s32.totalorder 1, %s20
      %p339 = scmp.lt.s32.totalorder %s20, 3
      %p340 = pnand %p338, %p339
      %p341 = pneg %p340
      // Predicated region
      $region61: #{eeg_transformer_block.1} parent=5 // pred_check
        _
      $region62: #{eeg_transformer_block.1} parent=5 // pred_check_branch
        %343 = sbr.rel (%p340) target = $region64
      $region63: #{eeg_transformer_block.1} parent=5 // pred_region
        %s344 = ssub.s32 %s20, 1
        %p345 = scmp.lt.s32.totalorder %s25, 1
        %s346 = scalar_select %p345, %s25, 1
        %s347 = smul.addr %s346, 8
        %s348 = scalar_lea.vmem %s0, %s347
        %p349 = pneg %p46
        %p350 = pneg %p43
        %p351 = pneg %p67
        %p352 = pneg %p64
        %p353 = pneg %p88
        %p354 = pneg %p85
        %p355 = pneg %p109
        %p356 = pneg %p106
        %p357 = pneg %p130
        %p358 = pneg %p127
        %p359 = pneg %p151
        %p360 = pneg %p148
        %p361 = pneg %p172
        %p362 = pneg %p169
        %p363 = pneg %p193
        %p364 = pneg %p190
        %p365 = pneg %p214
        %p366 = pneg %p211
        %p367 = pneg %p235
        %p368 = pneg %p232
        %p369 = pneg %p256
        %p370 = pneg %p253
        %p371 = pneg %p282
        %p372 = pneg %p279
        %s373 = sand.u32 %s269, 1
        %s374 = scalar_lea.sflag [#allocation4], %s373
        %s375 = sand.u32 %s269, 1
        %s376 = smul.addr %s375, 8
        %s377 = scalar_lea.vmem [#allocation3], %s376
        %p378 = scmp.lt.s32.totalorder %s25, 1
        %s379 = scalar_select %p378, %s25, 1
        %s380 = smul.addr %s379, 8
        %s381 = scalar_lea.vmem %s0, %s380
        %v382 = vld [vmem:[%s381] sm:$0xff]
        %v383 = vld [vmem:[%s10] sm:$0xff]
        %v384 = vld [vmem:[%s10 + $0x8] sm:$0x3]
        %v385 = vld [vmem:[%s1] sm:$0xff]
        %v386 = vld [vmem:[%s1 + $0x8] sm:$0xff]
        %v387 = vld [vmem:[%s1 + $0x10] sm:$0xff]
        %v388 = vld [vmem:[%s1 + $0x18] sm:$0xff]
        %v389 = vld [vmem:[%s2] sm:$0x1]
        %v391 = vlaneseq
        %v392 = vshrl.u32 %v391, 7
        %v393 = vsub.s32 0, %v392
        %v394 = vrot.slane %v389, %v393
        %vm396 = vcmask 261120
        %v398 = vsel %vm396, %v382, 0
        %400 = vmatprep.subr.mxu0 0.0
        %401 = vmatpush1.msra.mxu0 %v385
        %402 = vmatprep.subr.mxu0 0.0
        %403 = vmatpush1.msra.mxu0 %v386
        %404 = vmatprep.subr.mxu0 0.0
        %405 = vmatpush1.msra.mxu0 %v387
        %406 = vmatprep.subr.mxu0 0.0
        %407 = vmatpush1.msra.mxu0 %v388
        %408 = vmatprep.subr.mxu0 0.0
        %409 = vmatpush1.msra.mxu0 0.0
        %410 = vmatprep.subr.mxu0 0.0
        %411 = vmatpush1.msra.mxu0 0.0
        %412 = vmatprep.subr.mxu0 0.0
        %413 = vmatpush1.msra.mxu0 0.0
        %414 = vmatprep.subr.mxu0 0.0
        %415 = vmatpush1.msra.mxu0 0.0
        %416 = vmatprep.subr.mxu0 0.0
        %417 = vmatpush1.msra.mxu0 0.0
        %418 = vmatprep.subr.mxu0 0.0
        %419 = vmatpush1.msra.mxu0 0.0
        %420 = vmatprep.subr.mxu0 0.0
        %421 = vmatpush1.msra.mxu0 0.0
        %422 = vmatprep.subr.mxu0 0.0
        %423 = vmatpush1.msra.mxu0 0.0
        %424 = vmatprep.subr.mxu0 0.0
        %425 = vmatpush1.msra.mxu0 0.0
        %426 = vmatprep.subr.mxu0 0.0
        %427 = vmatpush1.msra.mxu0 0.0
        %428 = vmatprep.subr.mxu0 0.0
        %429 = vmatpush1.msra.mxu0 0.0
        %430 = vmatprep.subr.mxu0 0.0
        %431 = vmatpush1.msra.mxu0 0.0
        %432 = vmatprep.subr.mxu0 0.0
        %433 = vmatpush1.msra.mxu0 0.0
        %434 = vmatprep.subr.mxu0 0.0
        %435 = vmatpush1.msra.mxu0 0.0
        %436 = vmatprep.subr.mxu0 0.0
        %437 = vmatpush1.msra.mxu0 0.0
        %438 = vmatprep.subr.mxu0 0.0
        %439 = vmatpush1.msra.mxu0 0.0
        %440 = vmatprep.subr.mxu0 0.0
        %441 = vmatpush1.msra.mxu0 0.0
        %442 = vmatprep.subr.mxu0 0.0
        %443 = vmatpush1.msra.mxu0 0.0
        %444 = vmatprep.subr.mxu0 0.0
        %445 = vmatpush1.msra.mxu0 0.0
        %446 = vmatprep.subr.mxu0 0.0
        %447 = vmatpush1.msra.mxu0 0.0
        %448 = vmatprep.subr.mxu0 0.0
        %449 = vmatpush1.msra.mxu0 0.0
        %450 = vmatprep.subr.mxu0 0.0
        %451 = vmatpush1.msra.mxu0 0.0
        %452 = vmatprep.subr.mxu0 0.0
        %453 = vmatpush1.msra.mxu0 0.0
        %454 = vmatprep.subr.mxu0 0.0
        %455 = vmatpush1.msra.mxu0 0.0
        %456 = vmatprep.subr.mxu0 0.0
        %457 = vmatpush1.msra.mxu0 0.0
        %458 = vmatprep.subr.mxu0 0.0
        %459 = vmatpush1.msra.mxu0 0.0
        %460 = vmatprep.subr.mxu0 0.0
        %461 = vmatpush1.msra.mxu0 0.0
        %462 = vmatprep.subr.mxu0 0.0
        %463 = vmatpush1.msra.mxu0 0.0
        %464 = vmatprep.mubr.f32.mxu0 0.0
        %465 = vmatmul.mubr.f32.gmra.mrb[0].mxu0 %v398
        %v466 = vpop.f32.mrb[0].mxu0
        %v467 = vadd.f32 %v394, %v466
        %v468 = vpop.f32.mrb[0].mxu0
        %469 = vdwg.mxu0
        %471 = vrot.lane.b32.xlu0 %v467, 96
        %v472 = vpop.permute.xlu0 %471
        %vm473 = vcmask 64512
        %v474 = vsel %vm473, %v467, 0
        %v476 = vsel %vm473, %v472, 0
        %478 = vmatprep.subr.mxu0 0.0
        %479 = vmatpush1.xpose.msra.mxu0 %v476
        %480 = vmatprep.subr.mxu0 0.0
        %481 = vmatpush1.xpose.msra.mxu0 0.0
        %482 = vmatprep.subr.mxu0 0.0
        %483 = vmatpush1.xpose.msra.mxu0 0.0
        %484 = vmatprep.subr.mxu0 0.0
        %485 = vmatpush1.xpose.msra.mxu0 0.0
        %486 = vmatprep.subr.mxu0 0.0
        %487 = vmatpush1.xpose.msra.mxu0 0.0
        %488 = vmatprep.subr.mxu0 0.0
        %489 = vmatpush1.xpose.msra.mxu0 0.0
        %490 = vmatprep.subr.mxu0 0.0
        %491 = vmatpush1.xpose.msra.mxu0 0.0
        %492 = vmatprep.subr.mxu0 0.0
        %493 = vmatpush1.xpose.msra.mxu0 0.0
        %494 = vmatprep.subr.mxu0 0.0
        %495 = vmatpush1.xpose.msra.mxu0 0.0
        %496 = vmatprep.subr.mxu0 0.0
        %497 = vmatpush1.xpose.msra.mxu0 0.0
        %498 = vmatprep.subr.mxu0 0.0
        %499 = vmatpush1.xpose.msra.mxu0 0.0
        %500 = vmatprep.subr.mxu0 0.0
        %501 = vmatpush1.xpose.msra.mxu0 0.0
        %502 = vmatprep.subr.mxu0 0.0
        %503 = vmatpush1.xpose.msra.mxu0 0.0
        %504 = vmatprep.subr.mxu0 0.0
        %505 = vmatpush1.xpose.msra.mxu0 0.0
        %506 = vmatprep.subr.mxu0 0.0
        %507 = vmatpush1.xpose.msra.mxu0 0.0
        %508 = vmatprep.subr.mxu0 0.0
        %509 = vmatpush1.xpose.msra.mxu0 0.0
        %510 = vmatprep.subr.mxu0 0.0
        %511 = vmatpush1.xpose.msra.mxu0 0.0
        %512 = vmatprep.subr.mxu0 0.0
        %513 = vmatpush1.xpose.msra.mxu0 0.0
        %514 = vmatprep.subr.mxu0 0.0
        %515 = vmatpush1.xpose.msra.mxu0 0.0
        %516 = vmatprep.subr.mxu0 0.0
        %517 = vmatpush1.xpose.msra.mxu0 0.0
        %518 = vmatprep.subr.mxu0 0.0
        %519 = vmatpush1.xpose.msra.mxu0 0.0
        %520 = vmatprep.subr.mxu0 0.0
        %521 = vmatpush1.xpose.msra.mxu0 0.0
        %522 = vmatprep.subr.mxu0 0.0
        %523 = vmatpush1.xpose.msra.mxu0 0.0
        %524 = vmatprep.subr.mxu0 0.0
        %525 = vmatpush1.xpose.msra.mxu0 0.0
        %526 = vmatprep.subr.mxu0 0.0
        %527 = vmatpush1.xpose.msra.mxu0 0.0
        %528 = vmatprep.subr.mxu0 0.0
        %529 = vmatpush1.xpose.msra.mxu0 0.0
        %530 = vmatprep.subr.mxu0 0.0
        %531 = vmatpush1.xpose.msra.mxu0 0.0
        %532 = vmatprep.subr.mxu0 0.0
        %533 = vmatpush1.xpose.msra.mxu0 0.0
        %534 = vmatprep.subr.mxu0 0.0
        %535 = vmatpush1.xpose.msra.mxu0 0.0
        %536 = vmatprep.subr.mxu0 0.0
        %537 = vmatpush1.xpose.msra.mxu0 0.0
        %538 = vmatprep.subr.mxu0 0.0
        %539 = vmatpush1.xpose.msra.mxu0 0.0
        %540 = vmatprep.subr.mxu0 0.0
        %541 = vmatpush1.xpose.msra.mxu0 0.0
        %542 = vmatprep.mubr.f32.mxu0 0.0
        %543 = vmatmul.mubr.f32.gmra.mrb[0].mxu0 %v474
        %v544 = vpop.f32.mrb[0].mxu0
        %v545 = vadd.f32 0.0, %v544
        %v546 = vpop.f32.mrb[0].mxu0
        %547 = vdwg.mxu0
        %v548 = vmul.f32 %v545, 0.35355338
        %v549 = vsel %vm473, %v548, -inf
        %550 = vmax.xlane.f32.xlu0 %v549
        %v551 = vpop.xlane.xlu0 %550
        %v552 = vsub.f32 %v548, %v551
        %v553 = vmul.f32 %v552, 1.442695
        %v554 = vpow.pop %v553
        %v555 = vsel %vm473, %v554, 0.0
        %556 = vadd.xlane.f32.xlu0 %v555
        %v557 = vpop.xlane.xlu0 %556
        %v558 = vrcp.pop %v557
        %v559 = vmul.f32 %v554, %v558
        %560 = vrot.lane.b32.xlu0 %v467, 64
        %v561 = vpop.permute.xlu0 %560
        %v564 = vsel %vm473, %v559, 0
        %566 = vmatprep.subr.mxu0 0.0
        %567 = vmatpush1.msra.mxu0 %v561
        %568 = vmatprep.subr.mxu0 0.0
        %569 = vmatpush1.msra.mxu0 0.0
        %570 = vmatprep.subr.mxu0 0.0
        %571 = vmatpush1.msra.mxu0 0.0
        %572 = vmatprep.subr.mxu0 0.0
        %573 = vmatpush1.msra.mxu0 0.0
        %574 = vmatprep.subr.mxu0 0.0
        %575 = vmatpush1.msra.mxu0 0.0
        %576 = vmatprep.subr.mxu0 0.0
        %577 = vmatpush1.msra.mxu0 0.0
        %578 = vmatprep.subr.mxu0 0.0
        %579 = vmatpush1.msra.mxu0 0.0
        %580 = vmatprep.subr.mxu0 0.0
        %581 = vmatpush1.msra.mxu0 0.0
        %582 = vmatprep.subr.mxu0 0.0
        %583 = vmatpush1.msra.mxu0 0.0
        %584 = vmatprep.subr.mxu0 0.0
        %585 = vmatpush1.msra.mxu0 0.0
        %586 = vmatprep.subr.mxu0 0.0
        %587 = vmatpush1.msra.mxu0 0.0
        %588 = vmatprep.subr.mxu0 0.0
        %589 = vmatpush1.msra.mxu0 0.0
        %590 = vmatprep.subr.mxu0 0.0
        %591 = vmatpush1.msra.mxu0 0.0
        %592 = vmatprep.subr.mxu0 0.0
        %593 = vmatpush1.msra.mxu0 0.0
        %594 = vmatprep.subr.mxu0 0.0
        %595 = vmatpush1.msra.mxu0 0.0
        %596 = vmatprep.subr.mxu0 0.0
        %597 = vmatpush1.msra.mxu0 0.0
        %598 = vmatprep.subr.mxu0 0.0
        %599 = vmatpush1.msra.mxu0 0.0
        %600 = vmatprep.subr.mxu0 0.0
        %601 = vmatpush1.msra.mxu0 0.0
        %602 = vmatprep.subr.mxu0 0.0
        %603 = vmatpush1.msra.mxu0 0.0
        %604 = vmatprep.subr.mxu0 0.0
        %605 = vmatpush1.msra.mxu0 0.0
        %606 = vmatprep.subr.mxu0 0.0
        %607 = vmatpush1.msra.mxu0 0.0
        %608 = vmatprep.subr.mxu0 0.0
        %609 = vmatpush1.msra.mxu0 0.0
        %610 = vmatprep.subr.mxu0 0.0
        %611 = vmatpush1.msra.mxu0 0.0
        %612 = vmatprep.subr.mxu0 0.0
        %613 = vmatpush1.msra.mxu0 0.0
        %614 = vmatprep.subr.mxu0 0.0
        %615 = vmatpush1.msra.mxu0 0.0
        %616 = vmatprep.subr.mxu0 0.0
        %617 = vmatpush1.msra.mxu0 0.0
        %618 = vmatprep.subr.mxu0 0.0
        %619 = vmatpush1.msra.mxu0 0.0
        %620 = vmatprep.subr.mxu0 0.0
        %621 = vmatpush1.msra.mxu0 0.0
        %622 = vmatprep.subr.mxu0 0.0
        %623 = vmatpush1.msra.mxu0 0.0
        %624 = vmatprep.subr.mxu0 0.0
        %625 = vmatpush1.msra.mxu0 0.0
        %626 = vmatprep.subr.mxu0 0.0
        %627 = vmatpush1.msra.mxu0 0.0
        %628 = vmatprep.subr.mxu0 0.0
        %629 = vmatpush1.msra.mxu0 0.0
        %630 = vmatprep.mubr.f32.mxu0 0.0
        %631 = vmatmul.mubr.f32.gmra.mrb[0].mxu0 %v564
        %v632 = vpop.f32.mrb[0].mxu0
        %v633 = vadd.f32 0.0, %v632
        %v634 = vpop.f32.mrb[0].mxu0
        %635 = vdwg.mxu0
        %636 = vst.msk [vmem:[#allocation2] sm:$0xff] %vm473, %v633
        %637 = vrot.lane.b32.xlu0 %v467, 120
        %v638 = vpop.permute.xlu0 %637
        %639 = vrot.lane.b32.xlu0 %v467, 88
        %v640 = vpop.permute.xlu0 %639
        %v641 = vsel %vm473, %v638, 0
        %v643 = vsel %vm473, %v640, 0
        %645 = vmatprep.subr.mxu0 0.0
        %646 = vmatpush1.xpose.msra.mxu0 %v643
        %647 = vmatprep.subr.mxu0 0.0
        %648 = vmatpush1.xpose.msra.mxu0 0.0
        %649 = vmatprep.subr.mxu0 0.0
        %650 = vmatpush1.xpose.msra.mxu0 0.0
        %651 = vmatprep.subr.mxu0 0.0
        %652 = vmatpush1.xpose.msra.mxu0 0.0
        %653 = vmatprep.subr.mxu0 0.0
        %654 = vmatpush1.xpose.msra.mxu0 0.0
        %655 = vmatprep.subr.mxu0 0.0
        %656 = vmatpush1.xpose.msra.mxu0 0.0
        %657 = vmatprep.subr.mxu0 0.0
        %658 = vmatpush1.xpose.msra.mxu0 0.0
        %659 = vmatprep.subr.mxu0 0.0
        %660 = vmatpush1.xpose.msra.mxu0 0.0
        %661 = vmatprep.subr.mxu0 0.0
        %662 = vmatpush1.xpose.msra.mxu0 0.0
        %663 = vmatprep.subr.mxu0 0.0
        %664 = vmatpush1.xpose.msra.mxu0 0.0
        %665 = vmatprep.subr.mxu0 0.0
        %666 = vmatpush1.xpose.msra.mxu0 0.0
        %667 = vmatprep.subr.mxu0 0.0
        %668 = vmatpush1.xpose.msra.mxu0 0.0
        %669 = vmatprep.subr.mxu0 0.0
        %670 = vmatpush1.xpose.msra.mxu0 0.0
        %671 = vmatprep.subr.mxu0 0.0
        %672 = vmatpush1.xpose.msra.mxu0 0.0
        %673 = vmatprep.subr.mxu0 0.0
        %674 = vmatpush1.xpose.msra.mxu0 0.0
        %675 = vmatprep.subr.mxu0 0.0
        %676 = vmatpush1.xpose.msra.mxu0 0.0
        %677 = vmatprep.subr.mxu0 0.0
        %678 = vmatpush1.xpose.msra.mxu0 0.0
        %679 = vmatprep.subr.mxu0 0.0
        %680 = vmatpush1.xpose.msra.mxu0 0.0
        %681 = vmatprep.subr.mxu0 0.0
        %682 = vmatpush1.xpose.msra.mxu0 0.0
        %683 = vmatprep.subr.mxu0 0.0
        %684 = vmatpush1.xpose.msra.mxu0 0.0
        %685 = vmatprep.subr.mxu0 0.0
        %686 = vmatpush1.xpose.msra.mxu0 0.0
        %687 = vmatprep.subr.mxu0 0.0
        %688 = vmatpush1.xpose.msra.mxu0 0.0
        %689 = vmatprep.subr.mxu0 0.0
        %690 = vmatpush1.xpose.msra.mxu0 0.0
        %691 = vmatprep.subr.mxu0 0.0
        %692 = vmatpush1.xpose.msra.mxu0 0.0
        %693 = vmatprep.subr.mxu0 0.0
        %694 = vmatpush1.xpose.msra.mxu0 0.0
        %695 = vmatprep.subr.mxu0 0.0
        %696 = vmatpush1.xpose.msra.mxu0 0.0
        %697 = vmatprep.subr.mxu0 0.0
        %698 = vmatpush1.xpose.msra.mxu0 0.0
        %699 = vmatprep.subr.mxu0 0.0
        %700 = vmatpush1.xpose.msra.mxu0 0.0
        %701 = vmatprep.subr.mxu0 0.0
        %702 = vmatpush1.xpose.msra.mxu0 0.0
        %703 = vmatprep.subr.mxu0 0.0
        %704 = vmatpush1.xpose.msra.mxu0 0.0
        %705 = vmatprep.subr.mxu0 0.0
        %706 = vmatpush1.xpose.msra.mxu0 0.0
        %707 = vmatprep.subr.mxu0 0.0
        %708 = vmatpush1.xpose.msra.mxu0 0.0
        %709 = vmatprep.mubr.f32.mxu0 0.0
        %710 = vmatmul.mubr.f32.gmra.mrb[0].mxu0 %v641
        %v711 = vpop.f32.mrb[0].mxu0
        %v712 = vadd.f32 0.0, %v711
        %v713 = vpop.f32.mrb[0].mxu0
        %714 = vdwg.mxu0
        %v715 = vmul.f32 %v712, 0.35355338
        %v716 = vsel %vm473, %v715, -inf
        %717 = vmax.xlane.f32.xlu0 %v716
        %v718 = vpop.xlane.xlu0 %717
        %v719 = vsub.f32 %v715, %v718
        %v720 = vmul.f32 %v719, 1.442695
        %v721 = vpow.pop %v720
        %v722 = vsel %vm473, %v721, 0.0
        %723 = vadd.xlane.f32.xlu0 %v722
        %v724 = vpop.xlane.xlu0 %723
        %v725 = vrcp.pop %v724
        %v726 = vmul.f32 %v721, %v725
        %727 = vrot.lane.b32.xlu0 %v467, 56
        %v728 = vpop.permute.xlu0 %727
        %v731 = vsel %vm473, %v726, 0
        %733 = vmatprep.subr.mxu0 0.0
        %734 = vmatpush1.msra.mxu0 %v728
        %735 = vmatprep.subr.mxu0 0.0
        %736 = vmatpush1.msra.mxu0 0.0
        %737 = vmatprep.subr.mxu0 0.0
        %738 = vmatpush1.msra.mxu0 0.0
        %739 = vmatprep.subr.mxu0 0.0
        %740 = vmatpush1.msra.mxu0 0.0
        %741 = vmatprep.subr.mxu0 0.0
        %742 = vmatpush1.msra.mxu0 0.0
        %743 = vmatprep.subr.mxu0 0.0
        %744 = vmatpush1.msra.mxu0 0.0
        %745 = vmatprep.subr.mxu0 0.0
        %746 = vmatpush1.msra.mxu0 0.0
        %747 = vmatprep.subr.mxu0 0.0
        %748 = vmatpush1.msra.mxu0 0.0
        %749 = vmatprep.subr.mxu0 0.0
        %750 = vmatpush1.msra.mxu0 0.0
        %751 = vmatprep.subr.mxu0 0.0
        %752 = vmatpush1.msra.mxu0 0.0
        %753 = vmatprep.subr.mxu0 0.0
        %754 = vmatpush1.msra.mxu0 0.0
        %755 = vmatprep.subr.mxu0 0.0
        %756 = vmatpush1.msra.mxu0 0.0
        %757 = vmatprep.subr.mxu0 0.0
        %758 = vmatpush1.msra.mxu0 0.0
        %759 = vmatprep.subr.mxu0 0.0
        %760 = vmatpush1.msra.mxu0 0.0
        %761 = vmatprep.subr.mxu0 0.0
        %762 = vmatpush1.msra.mxu0 0.0
        %763 = vmatprep.subr.mxu0 0.0
        %764 = vmatpush1.msra.mxu0 0.0
        %765 = vmatprep.subr.mxu0 0.0
        %766 = vmatpush1.msra.mxu0 0.0
        %767 = vmatprep.subr.mxu0 0.0
        %768 = vmatpush1.msra.mxu0 0.0
        %769 = vmatprep.subr.mxu0 0.0
        %770 = vmatpush1.msra.mxu0 0.0
        %771 = vmatprep.subr.mxu0 0.0
        %772 = vmatpush1.msra.mxu0 0.0
        %773 = vmatprep.subr.mxu0 0.0
        %774 = vmatpush1.msra.mxu0 0.0
        %775 = vmatprep.subr.mxu0 0.0
        %776 = vmatpush1.msra.mxu0 0.0
        %777 = vmatprep.subr.mxu0 0.0
        %778 = vmatpush1.msra.mxu0 0.0
        %779 = vmatprep.subr.mxu0 0.0
        %780 = vmatpush1.msra.mxu0 0.0
        %781 = vmatprep.subr.mxu0 0.0
        %782 = vmatpush1.msra.mxu0 0.0
        %783 = vmatprep.subr.mxu0 0.0
        %784 = vmatpush1.msra.mxu0 0.0
        %785 = vmatprep.subr.mxu0 0.0
        %786 = vmatpush1.msra.mxu0 0.0
        %787 = vmatprep.subr.mxu0 0.0
        %788 = vmatpush1.msra.mxu0 0.0
        %789 = vmatprep.subr.mxu0 0.0
        %790 = vmatpush1.msra.mxu0 0.0
        %791 = vmatprep.subr.mxu0 0.0
        %792 = vmatpush1.msra.mxu0 0.0
        %793 = vmatprep.subr.mxu0 0.0
        %794 = vmatpush1.msra.mxu0 0.0
        %795 = vmatprep.subr.mxu0 0.0
        %796 = vmatpush1.msra.mxu0 0.0
        %797 = vmatprep.mubr.f32.mxu0 0.0
        %798 = vmatmul.mubr.f32.gmra.mrb[0].mxu0 %v731
        %v799 = vpop.f32.mrb[0].mxu0
        %v800 = vadd.f32 0.0, %v799
        %v801 = vpop.f32.mrb[0].mxu0
        %802 = vdwg.mxu0
        %804 = vrot.lane.b32.xlu0 %v800, 8
        %v805 = vpop.permute.xlu0 %804
        %vm807 = vcmask 130112
        %808 = vst.msk [vmem:[#allocation2] sm:$0xff] %vm807, %v805
        %809 = vrot.lane.b32.xlu0 %v467, 112
        %v810 = vpop.permute.xlu0 %809
        %811 = vrot.lane.b32.xlu0 %v467, 80
        %v812 = vpop.permute.xlu0 %811
        %v813 = vsel %vm473, %v810, 0
        %v815 = vsel %vm473, %v812, 0
        %817 = vmatprep.subr.mxu0 0.0
        %818 = vmatpush1.xpose.msra.mxu0 %v815
        %819 = vmatprep.subr.mxu0 0.0
        %820 = vmatpush1.xpose.msra.mxu0 0.0
        %821 = vmatprep.subr.mxu0 0.0
        %822 = vmatpush1.xpose.msra.mxu0 0.0
        %823 = vmatprep.subr.mxu0 0.0
        %824 = vmatpush1.xpose.msra.mxu0 0.0
        %825 = vmatprep.subr.mxu0 0.0
        %826 = vmatpush1.xpose.msra.mxu0 0.0
        %827 = vmatprep.subr.mxu0 0.0
        %828 = vmatpush1.xpose.msra.mxu0 0.0
        %829 = vmatprep.subr.mxu0 0.0
        %830 = vmatpush1.xpose.msra.mxu0 0.0
        %831 = vmatprep.subr.mxu0 0.0
        %832 = vmatpush1.xpose.msra.mxu0 0.0
        %833 = vmatprep.subr.mxu0 0.0
        %834 = vmatpush1.xpose.msra.mxu0 0.0
        %835 = vmatprep.subr.mxu0 0.0
        %836 = vmatpush1.xpose.msra.mxu0 0.0
        %837 = vmatprep.subr.mxu0 0.0
        %838 = vmatpush1.xpose.msra.mxu0 0.0
        %839 = vmatprep.subr.mxu0 0.0
        %840 = vmatpush1.xpose.msra.mxu0 0.0
        %841 = vmatprep.subr.mxu0 0.0
        %842 = vmatpush1.xpose.msra.mxu0 0.0
        %843 = vmatprep.subr.mxu0 0.0
        %844 = vmatpush1.xpose.msra.mxu0 0.0
        %845 = vmatprep.subr.mxu0 0.0
        %846 = vmatpush1.xpose.msra.mxu0 0.0
        %847 = vmatprep.subr.mxu0 0.0
        %848 = vmatpush1.xpose.msra.mxu0 0.0
        %849 = vmatprep.subr.mxu0 0.0
        %850 = vmatpush1.xpose.msra.mxu0 0.0
        %851 = vmatprep.subr.mxu0 0.0
        %852 = vmatpush1.xpose.msra.mxu0 0.0
        %853 = vmatprep.subr.mxu0 0.0
        %854 = vmatpush1.xpose.msra.mxu0 0.0
        %855 = vmatprep.subr.mxu0 0.0
        %856 = vmatpush1.xpose.msra.mxu0 0.0
        %857 = vmatprep.subr.mxu0 0.0
        %858 = vmatpush1.xpose.msra.mxu0 0.0
        %859 = vmatprep.subr.mxu0 0.0
        %860 = vmatpush1.xpose.msra.mxu0 0.0
        %861 = vmatprep.subr.mxu0 0.0
        %862 = vmatpush1.xpose.msra.mxu0 0.0
        %863 = vmatprep.subr.mxu0 0.0
        %864 = vmatpush1.xpose.msra.mxu0 0.0
        %865 = vmatprep.subr.mxu0 0.0
        %866 = vmatpush1.xpose.msra.mxu0 0.0
        %867 = vmatprep.subr.mxu0 0.0
        %868 = vmatpush1.xpose.msra.mxu0 0.0
        %869 = vmatprep.subr.mxu0 0.0
        %870 = vmatpush1.xpose.msra.mxu0 0.0
        %871 = vmatprep.subr.mxu0 0.0
        %872 = vmatpush1.xpose.msra.mxu0 0.0
        %873 = vmatprep.subr.mxu0 0.0
        %874 = vmatpush1.xpose.msra.mxu0 0.0
        %875 = vmatprep.subr.mxu0 0.0
        %876 = vmatpush1.xpose.msra.mxu0 0.0
        %877 = vmatprep.subr.mxu0 0.0
        %878 = vmatpush1.xpose.msra.mxu0 0.0
        %879 = vmatprep.subr.mxu0 0.0
        %880 = vmatpush1.xpose.msra.mxu0 0.0
        %881 = vmatprep.mubr.f32.mxu0 0.0
        %882 = vmatmul.mubr.f32.gmra.mrb[0].mxu0 %v813
        %v883 = vpop.f32.mrb[0].mxu0
        %v884 = vadd.f32 0.0, %v883
        %v885 = vpop.f32.mrb[0].mxu0
        %886 = vdwg.mxu0
        %v887 = vmul.f32 %v884, 0.35355338
        %v888 = vsel %vm473, %v887, -inf
        %889 = vmax.xlane.f32.xlu0 %v888
        %v890 = vpop.xlane.xlu0 %889
        %v891 = vsub.f32 %v887, %v890
        %v892 = vmul.f32 %v891, 1.442695
        %v893 = vpow.pop %v892
        %v894 = vsel %vm473, %v893, 0.0
        %895 = vadd.xlane.f32.xlu0 %v894
        %v896 = vpop.xlane.xlu0 %895
        %v897 = vrcp.pop %v896
        %v898 = vmul.f32 %v893, %v897
        %899 = vrot.lane.b32.xlu0 %v467, 48
        %v900 = vpop.permute.xlu0 %899
        %v903 = vsel %vm473, %v898, 0
        %905 = vmatprep.subr.mxu0 0.0
        %906 = vmatpush1.msra.mxu0 %v900
        %907 = vmatprep.subr.mxu0 0.0
        %908 = vmatpush1.msra.mxu0 0.0
        %909 = vmatprep.subr.mxu0 0.0
        %910 = vmatpush1.msra.mxu0 0.0
        %911 = vmatprep.subr.mxu0 0.0
        %912 = vmatpush1.msra.mxu0 0.0
        %913 = vmatprep.subr.mxu0 0.0
        %914 = vmatpush1.msra.mxu0 0.0
        %915 = vmatprep.subr.mxu0 0.0
        %916 = vmatpush1.msra.mxu0 0.0
        %917 = vmatprep.subr.mxu0 0.0
        %918 = vmatpush1.msra.mxu0 0.0
        %919 = vmatprep.subr.mxu0 0.0
        %920 = vmatpush1.msra.mxu0 0.0
        %921 = vmatprep.subr.mxu0 0.0
        %922 = vmatpush1.msra.mxu0 0.0
        %923 = vmatprep.subr.mxu0 0.0
        %924 = vmatpush1.msra.mxu0 0.0
        %925 = vmatprep.subr.mxu0 0.0
        %926 = vmatpush1.msra.mxu0 0.0
        %927 = vmatprep.subr.mxu0 0.0
        %928 = vmatpush1.msra.mxu0 0.0
        %929 = vmatprep.subr.mxu0 0.0
        %930 = vmatpush1.msra.mxu0 0.0
        %931 = vmatprep.subr.mxu0 0.0
        %932 = vmatpush1.msra.mxu0 0.0
        %933 = vmatprep.subr.mxu0 0.0
        %934 = vmatpush1.msra.mxu0 0.0
        %935 = vmatprep.subr.mxu0 0.0
        %936 = vmatpush1.msra.mxu0 0.0
        %937 = vmatprep.subr.mxu0 0.0
        %938 = vmatpush1.msra.mxu0 0.0
        %939 = vmatprep.subr.mxu0 0.0
        %940 = vmatpush1.msra.mxu0 0.0
        %941 = vmatprep.subr.mxu0 0.0
        %942 = vmatpush1.msra.mxu0 0.0
        %943 = vmatprep.subr.mxu0 0.0
        %944 = vmatpush1.msra.mxu0 0.0
        %945 = vmatprep.subr.mxu0 0.0
        %946 = vmatpush1.msra.mxu0 0.0
        %947 = vmatprep.subr.mxu0 0.0
        %948 = vmatpush1.msra.mxu0 0.0
        %949 = vmatprep.subr.mxu0 0.0
        %950 = vmatpush1.msra.mxu0 0.0
        %951 = vmatprep.subr.mxu0 0.0
        %952 = vmatpush1.msra.mxu0 0.0
        %953 = vmatprep.subr.mxu0 0.0
        %954 = vmatpush1.msra.mxu0 0.0
        %955 = vmatprep.subr.mxu0 0.0
        %956 = vmatpush1.msra.mxu0 0.0
        %957 = vmatprep.subr.mxu0 0.0
        %958 = vmatpush1.msra.mxu0 0.0
        %959 = vmatprep.subr.mxu0 0.0
        %960 = vmatpush1.msra.mxu0 0.0
        %961 = vmatprep.subr.mxu0 0.0
        %962 = vmatpush1.msra.mxu0 0.0
        %963 = vmatprep.subr.mxu0 0.0
        %964 = vmatpush1.msra.mxu0 0.0
        %965 = vmatprep.subr.mxu0 0.0
        %966 = vmatpush1.msra.mxu0 0.0
        %967 = vmatprep.subr.mxu0 0.0
        %968 = vmatpush1.msra.mxu0 0.0
        %969 = vmatprep.mubr.f32.mxu0 0.0
        %970 = vmatmul.mubr.f32.gmra.mrb[0].mxu0 %v903
        %v971 = vpop.f32.mrb[0].mxu0
        %v972 = vadd.f32 0.0, %v971
        %v973 = vpop.f32.mrb[0].mxu0
        %974 = vdwg.mxu0
        %976 = vrot.lane.b32.xlu0 %v972, 16
        %v977 = vpop.permute.xlu0 %976
        %vm979 = vcmask 195712
        %980 = vst.msk [vmem:[#allocation2] sm:$0xff] %vm979, %v977
        %981 = vrot.lane.b32.xlu0 %v467, 104
        %v982 = vpop.permute.xlu0 %981
        %983 = vrot.lane.b32.xlu0 %v467, 72
        %v984 = vpop.permute.xlu0 %983
        %v985 = vsel %vm473, %v982, 0
        %v987 = vsel %vm473, %v984, 0
        %989 = vmatprep.subr.mxu0 0.0
        %990 = vmatpush1.xpose.msra.mxu0 %v987
        %991 = vmatprep.subr.mxu0 0.0
        %992 = vmatpush1.xpose.msra.mxu0 0.0
        %993 = vmatprep.subr.mxu0 0.0
        %994 = vmatpush1.xpose.msra.mxu0 0.0
        %995 = vmatprep.subr.mxu0 0.0
        %996 = vmatpush1.xpose.msra.mxu0 0.0
        %997 = vmatprep.subr.mxu0 0.0
        %998 = vmatpush1.xpose.msra.mxu0 0.0
        %999 = vmatprep.subr.mxu0 0.0
        %1000 = vmatpush1.xpose.msra.mxu0 0.0
        %1001 = vmatprep.subr.mxu0 0.0
        %1002 = vmatpush1.xpose.msra.mxu0 0.0
        %1003 = vmatprep.subr.mxu0 0.0
        %1004 = vmatpush1.xpose.msra.mxu0 0.0
        %1005 = vmatprep.subr.mxu0 0.0
        %1006 = vmatpush1.xpose.msra.mxu0 0.0
        %1007 = vmatprep.subr.mxu0 0.0
        %1008 = vmatpush1.xpose.msra.mxu0 0.0
        %1009 = vmatprep.subr.mxu0 0.0
        %1010 = vmatpush1.xpose.msra.mxu0 0.0
        %1011 = vmatprep.subr.mxu0 0.0
        %1012 = vmatpush1.xpose.msra.mxu0 0.0
        %1013 = vmatprep.subr.mxu0 0.0
        %1014 = vmatpush1.xpose.msra.mxu0 0.0
        %1015 = vmatprep.subr.mxu0 0.0
        %1016 = vmatpush1.xpose.msra.mxu0 0.0
        %1017 = vmatprep.subr.mxu0 0.0
        %1018 = vmatpush1.xpose.msra.mxu0 0.0
        %1019 = vmatprep.subr.mxu0 0.0
        %1020 = vmatpush1.xpose.msra.mxu0 0.0
        %1021 = vmatprep.subr.mxu0 0.0
        %1022 = vmatpush1.xpose.msra.mxu0 0.0
        %1023 = vmatprep.subr.mxu0 0.0
        %1024 = vmatpush1.xpose.msra.mxu0 0.0
        %1025 = vmatprep.subr.mxu0 0.0
        %1026 = vmatpush1.xpose.msra.mxu0 0.0
        %1027 = vmatprep.subr.mxu0 0.0
        %1028 = vmatpush1.xpose.msra.mxu0 0.0
        %1029 = vmatprep.subr.mxu0 0.0
        %1030 = vmatpush1.xpose.msra.mxu0 0.0
        %1031 = vmatprep.subr.mxu0 0.0
        %1032 = vmatpush1.xpose.msra.mxu0 0.0
        %1033 = vmatprep.subr.mxu0 0.0
        %1034 = vmatpush1.xpose.msra.mxu0 0.0
        %1035 = vmatprep.subr.mxu0 0.0
        %1036 = vmatpush1.xpose.msra.mxu0 0.0
        %1037 = vmatprep.subr.mxu0 0.0
        %1038 = vmatpush1.xpose.msra.mxu0 0.0
        %1039 = vmatprep.subr.mxu0 0.0
        %1040 = vmatpush1.xpose.msra.mxu0 0.0
        %1041 = vmatprep.subr.mxu0 0.0
        %1042 = vmatpush1.xpose.msra.mxu0 0.0
        %1043 = vmatprep.subr.mxu0 0.0
        %1044 = vmatpush1.xpose.msra.mxu0 0.0
        %1045 = vmatprep.subr.mxu0 0.0
        %1046 = vmatpush1.xpose.msra.mxu0 0.0
        %1047 = vmatprep.subr.mxu0 0.0
        %1048 = vmatpush1.xpose.msra.mxu0 0.0
        %1049 = vmatprep.subr.mxu0 0.0
        %1050 = vmatpush1.xpose.msra.mxu0 0.0
        %1051 = vmatprep.subr.mxu0 0.0
        %1052 = vmatpush1.xpose.msra.mxu0 0.0
        %1053 = vmatprep.mubr.f32.mxu0 0.0
        %1054 = vmatmul.mubr.f32.gmra.mrb[0].mxu0 %v985
        %v1055 = vpop.f32.mrb[0].mxu0
        %v1056 = vadd.f32 0.0, %v1055
        %v1057 = vpop.f32.mrb[0].mxu0
        %1058 = vdwg.mxu0
        %v1059 = vmul.f32 %v1056, 0.35355338
        %v1060 = vsel %vm473, %v1059, -inf
        %1061 = vmax.xlane.f32.xlu0 %v1060
        %v1062 = vpop.xlane.xlu0 %1061
        %v1063 = vsub.f32 %v1059, %v1062
        %v1064 = vmul.f32 %v1063, 1.442695
        %v1065 = vpow.pop %v1064
        %v1066 = vsel %vm473, %v1065, 0.0
        %1067 = vadd.xlane.f32.xlu0 %v1066
        %v1068 = vpop.xlane.xlu0 %1067
        %v1069 = vrcp.pop %v1068
        %v1070 = vmul.f32 %v1065, %v1069
        %1071 = vrot.lane.b32.xlu0 %v467, 40
        %v1072 = vpop.permute.xlu0 %1071
        %v1075 = vsel %vm473, %v1070, 0
        %1077 = vmatprep.subr.mxu0 0.0
        %1078 = vmatpush1.msra.mxu0 %v1072
        %1079 = vmatprep.subr.mxu0 0.0
        %1080 = vmatpush1.msra.mxu0 0.0
        %1081 = vmatprep.subr.mxu0 0.0
        %1082 = vmatpush1.msra.mxu0 0.0
        %1083 = vmatprep.subr.mxu0 0.0
        %1084 = vmatpush1.msra.mxu0 0.0
        %1085 = vmatprep.subr.mxu0 0.0
        %1086 = vmatpush1.msra.mxu0 0.0
        %1087 = vmatprep.subr.mxu0 0.0
        %1088 = vmatpush1.msra.mxu0 0.0
        %1089 = vmatprep.subr.mxu0 0.0
        %1090 = vmatpush1.msra.mxu0 0.0
        %1091 = vmatprep.subr.mxu0 0.0
        %1092 = vmatpush1.msra.mxu0 0.0
        %1093 = vmatprep.subr.mxu0 0.0
        %1094 = vmatpush1.msra.mxu0 0.0
        %1095 = vmatprep.subr.mxu0 0.0
        %1096 = vmatpush1.msra.mxu0 0.0
        %1097 = vmatprep.subr.mxu0 0.0
        %1098 = vmatpush1.msra.mxu0 0.0
        %1099 = vmatprep.subr.mxu0 0.0
        %1100 = vmatpush1.msra.mxu0 0.0
        %1101 = vmatprep.subr.mxu0 0.0
        %1102 = vmatpush1.msra.mxu0 0.0
        %1103 = vmatprep.subr.mxu0 0.0
        %1104 = vmatpush1.msra.mxu0 0.0
        %1105 = vmatprep.subr.mxu0 0.0
        %1106 = vmatpush1.msra.mxu0 0.0
        %1107 = vmatprep.subr.mxu0 0.0
        %1108 = vmatpush1.msra.mxu0 0.0
        %1109 = vmatprep.subr.mxu0 0.0
        %1110 = vmatpush1.msra.mxu0 0.0
        %1111 = vmatprep.subr.mxu0 0.0
        %1112 = vmatpush1.msra.mxu0 0.0
        %1113 = vmatprep.subr.mxu0 0.0
        %1114 = vmatpush1.msra.mxu0 0.0
        %1115 = vmatprep.subr.mxu0 0.0
        %1116 = vmatpush1.msra.mxu0 0.0
        %1117 = vmatprep.subr.mxu0 0.0
        %1118 = vmatpush1.msra.mxu0 0.0
        %1119 = vmatprep.subr.mxu0 0.0
        %1120 = vmatpush1.msra.mxu0 0.0
        %1121 = vmatprep.subr.mxu0 0.0
        %1122 = vmatpush1.msra.mxu0 0.0
        %1123 = vmatprep.subr.mxu0 0.0
        %1124 = vmatpush1.msra.mxu0 0.0
        %1125 = vmatprep.subr.mxu0 0.0
        %1126 = vmatpush1.msra.mxu0 0.0
        %1127 = vmatprep.subr.mxu0 0.0
        %1128 = vmatpush1.msra.mxu0 0.0
        %1129 = vmatprep.subr.mxu0 0.0
        %1130 = vmatpush1.msra.mxu0 0.0
        %1131 = vmatprep.subr.mxu0 0.0
        %1132 = vmatpush1.msra.mxu0 0.0
        %1133 = vmatprep.subr.mxu0 0.0
        %1134 = vmatpush1.msra.mxu0 0.0
        %1135 = vmatprep.subr.mxu0 0.0
        %1136 = vmatpush1.msra.mxu0 0.0
        %1137 = vmatprep.subr.mxu0 0.0
        %1138 = vmatpush1.msra.mxu0 0.0
        %1139 = vmatprep.subr.mxu0 0.0
        %1140 = vmatpush1.msra.mxu0 0.0
        %1141 = vmatprep.mubr.f32.mxu0 0.0
        %1142 = vmatmul.mubr.f32.gmra.mrb[0].mxu0 %v1075
        %v1143 = vpop.f32.mrb[0].mxu0
        %v1144 = vadd.f32 0.0, %v1143
        %v1145 = vpop.f32.mrb[0].mxu0
        %1146 = vdwg.mxu0
        %1148 = vrot.lane.b32.xlu0 %v1144, 24
        %v1149 = vpop.permute.xlu0 %1148
        %vm1151 = vcmask 261312
        %1152 = vst.msk [vmem:[#allocation2] sm:$0xff] %vm1151, %v1149
        %v1153 = vld [vmem:[#allocation2] sm:$0xff]
        %v1154 = vld [vmem:[%s3] sm:$0xff]
        %v1155 = vld [vmem:[%s3 + $0x8] sm:$0xff]
        %v1156 = vld [vmem:[%s3 + $0x10] sm:$0xff]
        %v1157 = vld [vmem:[%s3 + $0x18] sm:$0xff]
        %v1158 = vlaneseq
        %v1159 = vshrl.u32 %v1158, 7
        %v1160 = vsub.s32 0, %v1159
        %v1161 = vrot.slane %v383, %v1160
        %v1163 = vsel %vm396, %v1153, 0
        %1165 = vmatprep.subr.mxu0 0.0
        %1166 = vmatpush1.msra.mxu0 %v1154
        %1167 = vmatprep.subr.mxu0 0.0
        %1168 = vmatpush1.msra.mxu0 %v1155
        %1169 = vmatprep.subr.mxu0 0.0
        %1170 = vmatpush1.msra.mxu0 %v1156
        %1171 = vmatprep.subr.mxu0 0.0
        %1172 = vmatpush1.msra.mxu0 %v1157
        %1173 = vmatprep.subr.mxu0 0.0
        %1174 = vmatpush1.msra.mxu0 0.0
        %1175 = vmatprep.subr.mxu0 0.0
        %1176 = vmatpush1.msra.mxu0 0.0
        %1177 = vmatprep.subr.mxu0 0.0
        %1178 = vmatpush1.msra.mxu0 0.0
        %1179 = vmatprep.subr.mxu0 0.0
        %1180 = vmatpush1.msra.mxu0 0.0
        %1181 = vmatprep.subr.mxu0 0.0
        %1182 = vmatpush1.msra.mxu0 0.0
        %1183 = vmatprep.subr.mxu0 0.0
        %1184 = vmatpush1.msra.mxu0 0.0
        %1185 = vmatprep.subr.mxu0 0.0
        %1186 = vmatpush1.msra.mxu0 0.0
        %1187 = vmatprep.subr.mxu0 0.0
        %1188 = vmatpush1.msra.mxu0 0.0
        %1189 = vmatprep.subr.mxu0 0.0
        %1190 = vmatpush1.msra.mxu0 0.0
        %1191 = vmatprep.subr.mxu0 0.0
        %1192 = vmatpush1.msra.mxu0 0.0
        %1193 = vmatprep.subr.mxu0 0.0
        %1194 = vmatpush1.msra.mxu0 0.0
        %1195 = vmatprep.subr.mxu0 0.0
        %1196 = vmatpush1.msra.mxu0 0.0
        %1197 = vmatprep.subr.mxu0 0.0
        %1198 = vmatpush1.msra.mxu0 0.0
        %1199 = vmatprep.subr.mxu0 0.0
        %1200 = vmatpush1.msra.mxu0 0.0
        %1201 = vmatprep.subr.mxu0 0.0
        %1202 = vmatpush1.msra.mxu0 0.0
        %1203 = vmatprep.subr.mxu0 0.0
        %1204 = vmatpush1.msra.mxu0 0.0
        %1205 = vmatprep.subr.mxu0 0.0
        %1206 = vmatpush1.msra.mxu0 0.0
        %1207 = vmatprep.subr.mxu0 0.0
        %1208 = vmatpush1.msra.mxu0 0.0
        %1209 = vmatprep.subr.mxu0 0.0
        %1210 = vmatpush1.msra.mxu0 0.0
        %1211 = vmatprep.subr.mxu0 0.0
        %1212 = vmatpush1.msra.mxu0 0.0
        %1213 = vmatprep.subr.mxu0 0.0
        %1214 = vmatpush1.msra.mxu0 0.0
        %1215 = vmatprep.subr.mxu0 0.0
        %1216 = vmatpush1.msra.mxu0 0.0
        %1217 = vmatprep.subr.mxu0 0.0
        %1218 = vmatpush1.msra.mxu0 0.0
        %1219 = vmatprep.subr.mxu0 0.0
        %1220 = vmatpush1.msra.mxu0 0.0
        %1221 = vmatprep.subr.mxu0 0.0
        %1222 = vmatpush1.msra.mxu0 0.0
        %1223 = vmatprep.subr.mxu0 0.0
        %1224 = vmatpush1.msra.mxu0 0.0
        %1225 = vmatprep.subr.mxu0 0.0
        %1226 = vmatpush1.msra.mxu0 0.0
        %1227 = vmatprep.subr.mxu0 0.0
        %1228 = vmatpush1.msra.mxu0 0.0
        %1229 = vmatprep.mubr.f32.mxu0 0.0
        %1230 = vmatmul.mubr.f32.gmra.mrb[0].mxu0 %v1163
        %v1231 = vpop.f32.mrb[0].mxu0
        %v1232 = vadd.f32 %v1161, %v1231
        %v1233 = vpop.f32.mrb[0].mxu0
        %1234 = vdwg.mxu0
        %v1235 = vadd.f32 %v382, %v1232
        %v1236 = vsel %vm396, %v1235, 0.0
        %1237 = vadd.xlane.f32.xlu0 %v1236
        %v1238 = vpop.xlane.xlu0 %1237
        %v1239 = vrcp.pop 32.0
        %v1240 = vmul.f32 %v1238, %v1239
        %v1241 = vsub.f32 %v1235, %v1240
        %v1242 = vmul.f32 %v1241, %v1241
        %v1243 = vsel %vm396, %v1242, 0.0
        %1244 = vadd.xlane.f32.xlu0 %v1243
        %v1245 = vpop.xlane.xlu0 %1244
        %v1246 = vmul.f32 %v1245, %v1239
        %v1247 = vadd.f32 %v1246, 1e-05
        %v1248 = vrsqrt.pop %v1247
        %v1249 = vmul.f32 %v1241, %v1248
        %v1250 = vlaneseq
        %v1251 = vshrl.u32 %v1250, 7
        %v1252 = vsub.s32 4, %v1251
        %v1253 = vrot.slane %v383, %v1252
        %v1254 = vmul.f32 %v1249, %v1253
        %v1255 = vlaneseq
        %v1256 = vshrl.u32 %v1255, 7
        %v1257 = vsub.s32 5, %v1256
        %v1258 = vrot.slane %v383, %v1257
        %v1259 = vadd.f32 %v1254, %v1258
        %v1260 = vld [vmem:[%s9] sm:$0xf]
        %s1261 = scalar_lea.vmem %s3, 32
        %v1262 = vld [vmem:[%s1261] sm:$0xff]
        %v1263 = vld [vmem:[%s1261 + $0x8] sm:$0xff]
        %v1264 = vld [vmem:[%s1261 + $0x10] sm:$0xff]
        %v1265 = vld [vmem:[%s1261 + $0x18] sm:$0xff]
        %v1266 = vlaneseq
        %v1267 = vshrl.u32 %v1266, 7
        %v1268 = vsub.s32 1, %v1267
        %v1269 = vrot.slane %v383, %v1268
        %v1271 = vsel %vm396, %v1259, 0
        %1273 = vmatprep.subr.mxu0 0.0
        %1274 = vmatpush1.msra.mxu0 %v1262
        %1275 = vmatprep.subr.mxu0 0.0
        %1276 = vmatpush1.msra.mxu0 %v1263
        %1277 = vmatprep.subr.mxu0 0.0
        %1278 = vmatpush1.msra.mxu0 %v1264
        %1279 = vmatprep.subr.mxu0 0.0
        %1280 = vmatpush1.msra.mxu0 %v1265
        %1281 = vmatprep.subr.mxu0 0.0
        %1282 = vmatpush1.msra.mxu0 0.0
        %1283 = vmatprep.subr.mxu0 0.0
        %1284 = vmatpush1.msra.mxu0 0.0
        %1285 = vmatprep.subr.mxu0 0.0
        %1286 = vmatpush1.msra.mxu0 0.0
        %1287 = vmatprep.subr.mxu0 0.0
        %1288 = vmatpush1.msra.mxu0 0.0
        %1289 = vmatprep.subr.mxu0 0.0
        %1290 = vmatpush1.msra.mxu0 0.0
        %1291 = vmatprep.subr.mxu0 0.0
        %1292 = vmatpush1.msra.mxu0 0.0
        %1293 = vmatprep.subr.mxu0 0.0
        %1294 = vmatpush1.msra.mxu0 0.0
        %1295 = vmatprep.subr.mxu0 0.0
        %1296 = vmatpush1.msra.mxu0 0.0
        %1297 = vmatprep.subr.mxu0 0.0
        %1298 = vmatpush1.msra.mxu0 0.0
        %1299 = vmatprep.subr.mxu0 0.0
        %1300 = vmatpush1.msra.mxu0 0.0
        %1301 = vmatprep.subr.mxu0 0.0
        %1302 = vmatpush1.msra.mxu0 0.0
        %1303 = vmatprep.subr.mxu0 0.0
        %1304 = vmatpush1.msra.mxu0 0.0
        %1305 = vmatprep.subr.mxu0 0.0
        %1306 = vmatpush1.msra.mxu0 0.0
        %1307 = vmatprep.subr.mxu0 0.0
        %1308 = vmatpush1.msra.mxu0 0.0
        %1309 = vmatprep.subr.mxu0 0.0
        %1310 = vmatpush1.msra.mxu0 0.0
        %1311 = vmatprep.subr.mxu0 0.0
        %1312 = vmatpush1.msra.mxu0 0.0
        %1313 = vmatprep.subr.mxu0 0.0
        %1314 = vmatpush1.msra.mxu0 0.0
        %1315 = vmatprep.subr.mxu0 0.0
        %1316 = vmatpush1.msra.mxu0 0.0
        %1317 = vmatprep.subr.mxu0 0.0
        %1318 = vmatpush1.msra.mxu0 0.0
        %1319 = vmatprep.subr.mxu0 0.0
        %1320 = vmatpush1.msra.mxu0 0.0
        %1321 = vmatprep.subr.mxu0 0.0
        %1322 = vmatpush1.msra.mxu0 0.0
        %1323 = vmatprep.subr.mxu0 0.0
        %1324 = vmatpush1.msra.mxu0 0.0
        %1325 = vmatprep.subr.mxu0 0.0
        %1326 = vmatpush1.msra.mxu0 0.0
        %1327 = vmatprep.subr.mxu0 0.0
        %1328 = vmatpush1.msra.mxu0 0.0
        %1329 = vmatprep.subr.mxu0 0.0
        %1330 = vmatpush1.msra.mxu0 0.0
        %1331 = vmatprep.subr.mxu0 0.0
        %1332 = vmatpush1.msra.mxu0 0.0
        %1333 = vmatprep.subr.mxu0 0.0
        %1334 = vmatpush1.msra.mxu0 0.0
        %1335 = vmatprep.subr.mxu0 0.0
        %1336 = vmatpush1.msra.mxu0 0.0
        %1337 = vmatprep.mubr.f32.mxu0 0.0
        %1338 = vmatmul.mubr.f32.gmra.mrb[0].mxu0 %v1271
        %v1339 = vpop.f32.mrb[0].mxu0
        %v1340 = vadd.f32 %v1269, %v1339
        %v1341 = vpop.f32.mrb[0].mxu0
        %1342 = vdwg.mxu0
        %v1343 = vld [vmem:[%s4] sm:$0xff]
        %v1344 = vld [vmem:[%s4 + $0x8] sm:$0xff]
        %v1345 = vld [vmem:[%s4 + $0x10] sm:$0xff]
        %v1346 = vld [vmem:[%s4 + $0x18] sm:$0xff]
        %v1347 = vld [vmem:[%s5] sm:$0x1]
        %v1349 = vlaneseq
        %v1350 = vshrl.u32 %v1349, 7
        %v1351 = vsub.s32 0, %v1350
        %v1352 = vrot.slane %v1347, %v1351
        %v1355 = vsel %vm396, %v1260, 0
        %1357 = vmatprep.subr.mxu0 0.0
        %1358 = vmatpush1.msra.mxu0 %v1343
        %1359 = vmatprep.subr.mxu0 0.0
        %1360 = vmatpush1.msra.mxu0 %v1344
        %1361 = vmatprep.subr.mxu0 0.0
        %1362 = vmatpush1.msra.mxu0 %v1345
        %1363 = vmatprep.subr.mxu0 0.0
        %1364 = vmatpush1.msra.mxu0 %v1346
        %1365 = vmatprep.subr.mxu0 0.0
        %1366 = vmatpush1.msra.mxu0 0.0
        %1367 = vmatprep.subr.mxu0 0.0
        %1368 = vmatpush1.msra.mxu0 0.0
        %1369 = vmatprep.subr.mxu0 0.0
        %1370 = vmatpush1.msra.mxu0 0.0
        %1371 = vmatprep.subr.mxu0 0.0
        %1372 = vmatpush1.msra.mxu0 0.0
        %1373 = vmatprep.subr.mxu0 0.0
        %1374 = vmatpush1.msra.mxu0 0.0
        %1375 = vmatprep.subr.mxu0 0.0
        %1376 = vmatpush1.msra.mxu0 0.0
        %1377 = vmatprep.subr.mxu0 0.0
        %1378 = vmatpush1.msra.mxu0 0.0
        %1379 = vmatprep.subr.mxu0 0.0
        %1380 = vmatpush1.msra.mxu0 0.0
        %1381 = vmatprep.subr.mxu0 0.0
        %1382 = vmatpush1.msra.mxu0 0.0
        %1383 = vmatprep.subr.mxu0 0.0
        %1384 = vmatpush1.msra.mxu0 0.0
        %1385 = vmatprep.subr.mxu0 0.0
        %1386 = vmatpush1.msra.mxu0 0.0
        %1387 = vmatprep.subr.mxu0 0.0
        %1388 = vmatpush1.msra.mxu0 0.0
        %1389 = vmatprep.subr.mxu0 0.0
        %1390 = vmatpush1.msra.mxu0 0.0
        %1391 = vmatprep.subr.mxu0 0.0
        %1392 = vmatpush1.msra.mxu0 0.0
        %1393 = vmatprep.subr.mxu0 0.0
        %1394 = vmatpush1.msra.mxu0 0.0
        %1395 = vmatprep.subr.mxu0 0.0
        %1396 = vmatpush1.msra.mxu0 0.0
        %1397 = vmatprep.subr.mxu0 0.0
        %1398 = vmatpush1.msra.mxu0 0.0
        %1399 = vmatprep.subr.mxu0 0.0
        %1400 = vmatpush1.msra.mxu0 0.0
        %1401 = vmatprep.subr.mxu0 0.0
        %1402 = vmatpush1.msra.mxu0 0.0
        %1403 = vmatprep.subr.mxu0 0.0
        %1404 = vmatpush1.msra.mxu0 0.0
        %1405 = vmatprep.subr.mxu0 0.0
        %1406 = vmatpush1.msra.mxu0 0.0
        %1407 = vmatprep.subr.mxu0 0.0
        %1408 = vmatpush1.msra.mxu0 0.0
        %1409 = vmatprep.subr.mxu0 0.0
        %1410 = vmatpush1.msra.mxu0 0.0
        %1411 = vmatprep.subr.mxu0 0.0
        %1412 = vmatpush1.msra.mxu0 0.0
        %1413 = vmatprep.subr.mxu0 0.0
        %1414 = vmatpush1.msra.mxu0 0.0
        %1415 = vmatprep.subr.mxu0 0.0
        %1416 = vmatpush1.msra.mxu0 0.0
        %1417 = vmatprep.subr.mxu0 0.0
        %1418 = vmatpush1.msra.mxu0 0.0
        %1419 = vmatprep.subr.mxu0 0.0
        %1420 = vmatpush1.msra.mxu0 0.0
        %1421 = vmatprep.mubr.f32.mxu0 0.0
        %1422 = vmatmul.mubr.f32.gmra.mrb[0].mxu0 %v1355
        %v1423 = vpop.f32.mrb[0].mxu0
        %v1424 = vadd.f32 %v1352, %v1423
        %v1425 = vpop.f32.mrb[0].mxu0
        %1426 = vdwg.mxu0
        %vm1427 = vcmask 130048
        %v1429 = vsel %vm1427, %v1340, 0
        %v1432 = vsel %vm1427, %v1424, 0
        %1434 = vmatprep.subr.mxu0 0.0
        %1435 = vmatpush1.xpose.msra.mxu0 %v1432
        %1436 = vmatprep.subr.mxu0 0.0
        %1437 = vmatpush1.xpose.msra.mxu0 0.0
        %1438 = vmatprep.subr.mxu0 0.0
        %1439 = vmatpush1.xpose.msra.mxu0 0.0
        %1440 = vmatprep.subr.mxu0 0.0
        %1441 = vmatpush1.xpose.msra.mxu0 0.0
        %1442 = vmatprep.subr.mxu0 0.0
        %1443 = vmatpush1.xpose.msra.mxu0 0.0
        %1444 = vmatprep.subr.mxu0 0.0
        %1445 = vmatpush1.xpose.msra.mxu0 0.0
        %1446 = vmatprep.subr.mxu0 0.0
        %1447 = vmatpush1.xpose.msra.mxu0 0.0
        %1448 = vmatprep.subr.mxu0 0.0
        %1449 = vmatpush1.xpose.msra.mxu0 0.0
        %1450 = vmatprep.subr.mxu0 0.0
        %1451 = vmatpush1.xpose.msra.mxu0 0.0
        %1452 = vmatprep.subr.mxu0 0.0
        %1453 = vmatpush1.xpose.msra.mxu0 0.0
        %1454 = vmatprep.subr.mxu0 0.0
        %1455 = vmatpush1.xpose.msra.mxu0 0.0
        %1456 = vmatprep.subr.mxu0 0.0
        %1457 = vmatpush1.xpose.msra.mxu0 0.0
        %1458 = vmatprep.subr.mxu0 0.0
        %1459 = vmatpush1.xpose.msra.mxu0 0.0
        %1460 = vmatprep.subr.mxu0 0.0
        %1461 = vmatpush1.xpose.msra.mxu0 0.0
        %1462 = vmatprep.subr.mxu0 0.0
        %1463 = vmatpush1.xpose.msra.mxu0 0.0
        %1464 = vmatprep.subr.mxu0 0.0
        %1465 = vmatpush1.xpose.msra.mxu0 0.0
        %1466 = vmatprep.subr.mxu0 0.0
        %1467 = vmatpush1.xpose.msra.mxu0 0.0
        %1468 = vmatprep.subr.mxu0 0.0
        %1469 = vmatpush1.xpose.msra.mxu0 0.0
        %1470 = vmatprep.subr.mxu0 0.0
        %1471 = vmatpush1.xpose.msra.mxu0 0.0
        %1472 = vmatprep.subr.mxu0 0.0
        %1473 = vmatpush1.xpose.msra.mxu0 0.0
        %1474 = vmatprep.subr.mxu0 0.0
        %1475 = vmatpush1.xpose.msra.mxu0 0.0
        %1476 = vmatprep.subr.mxu0 0.0
        %1477 = vmatpush1.xpose.msra.mxu0 0.0
        %1478 = vmatprep.subr.mxu0 0.0
        %1479 = vmatpush1.xpose.msra.mxu0 0.0
        %1480 = vmatprep.subr.mxu0 0.0
        %1481 = vmatpush1.xpose.msra.mxu0 0.0
        %1482 = vmatprep.subr.mxu0 0.0
        %1483 = vmatpush1.xpose.msra.mxu0 0.0
        %1484 = vmatprep.subr.mxu0 0.0
        %1485 = vmatpush1.xpose.msra.mxu0 0.0
        %1486 = vmatprep.subr.mxu0 0.0
        %1487 = vmatpush1.xpose.msra.mxu0 0.0
        %1488 = vmatprep.subr.mxu0 0.0
        %1489 = vmatpush1.xpose.msra.mxu0 0.0
        %1490 = vmatprep.subr.mxu0 0.0
        %1491 = vmatpush1.xpose.msra.mxu0 0.0
        %1492 = vmatprep.subr.mxu0 0.0
        %1493 = vmatpush1.xpose.msra.mxu0 0.0
        %1494 = vmatprep.subr.mxu0 0.0
        %1495 = vmatpush1.xpose.msra.mxu0 0.0
        %1496 = vmatprep.subr.mxu0 0.0
        %1497 = vmatpush1.xpose.msra.mxu0 0.0
        %1498 = vmatprep.mubr.f32.mxu0 0.0
        %1499 = vmatmul.mubr.f32.gmra.mrb[0].mxu0 %v1429
        %v1500 = vpop.f32.mrb[0].mxu0
        %v1501 = vadd.f32 0.0, %v1500
        %v1502 = vpop.f32.mrb[0].mxu0
        %1503 = vdwg.mxu0
        %v1504 = vmul.f32 %v1501, 0.25
        %vm1505 = vcmask 31744
        %v1506 = vsel %vm1505, %v1504, -inf
        %1507 = vmax.xlane.f32.xlu0 %v1506
        %v1508 = vpop.xlane.xlu0 %1507
        %v1509 = vsub.f32 %v1504, %v1508
        %v1510 = vmul.f32 %v1509, 1.442695
        %v1511 = vpow.pop %v1510
        %v1512 = vsel %vm1505, %v1511, 0.0
        %1513 = vadd.xlane.f32.xlu0 %v1512
        %v1514 = vpop.xlane.xlu0 %1513
        %v1515 = vrcp.pop %v1514
        %v1516 = vmul.f32 %v1511, %v1515
        %1517 = vrot.lane.b32.xlu0 %v1424, 96
        %v1518 = vpop.permute.xlu0 %1517
        %v1520 = vsel %vm1505, %v1516, 0
        %vm1522 = vcmask 1043456
        %v1523 = vsel %vm1522, %v1518, 0
        %1525 = vmatprep.subr.mxu0 0.0
        %1526 = vmatpush1.msra.mxu0 %v1523
        %1527 = vmatprep.subr.mxu0 0.0
        %1528 = vmatpush1.msra.mxu0 0.0
        %1529 = vmatprep.subr.mxu0 0.0
        %1530 = vmatpush1.msra.mxu0 0.0
        %1531 = vmatprep.subr.mxu0 0.0
        %1532 = vmatpush1.msra.mxu0 0.0
        %1533 = vmatprep.subr.mxu0 0.0
        %1534 = vmatpush1.msra.mxu0 0.0
        %1535 = vmatprep.subr.mxu0 0.0
        %1536 = vmatpush1.msra.mxu0 0.0
        %1537 = vmatprep.subr.mxu0 0.0
        %1538 = vmatpush1.msra.mxu0 0.0
        %1539 = vmatprep.subr.mxu0 0.0
        %1540 = vmatpush1.msra.mxu0 0.0
        %1541 = vmatprep.subr.mxu0 0.0
        %1542 = vmatpush1.msra.mxu0 0.0
        %1543 = vmatprep.subr.mxu0 0.0
        %1544 = vmatpush1.msra.mxu0 0.0
        %1545 = vmatprep.subr.mxu0 0.0
        %1546 = vmatpush1.msra.mxu0 0.0
        %1547 = vmatprep.subr.mxu0 0.0
        %1548 = vmatpush1.msra.mxu0 0.0
        %1549 = vmatprep.subr.mxu0 0.0
        %1550 = vmatpush1.msra.mxu0 0.0
        %1551 = vmatprep.subr.mxu0 0.0
        %1552 = vmatpush1.msra.mxu0 0.0
        %1553 = vmatprep.subr.mxu0 0.0
        %1554 = vmatpush1.msra.mxu0 0.0
        %1555 = vmatprep.subr.mxu0 0.0
        %1556 = vmatpush1.msra.mxu0 0.0
        %1557 = vmatprep.subr.mxu0 0.0
        %1558 = vmatpush1.msra.mxu0 0.0
        %1559 = vmatprep.subr.mxu0 0.0
        %1560 = vmatpush1.msra.mxu0 0.0
        %1561 = vmatprep.subr.mxu0 0.0
        %1562 = vmatpush1.msra.mxu0 0.0
        %1563 = vmatprep.subr.mxu0 0.0
        %1564 = vmatpush1.msra.mxu0 0.0
        %1565 = vmatprep.subr.mxu0 0.0
        %1566 = vmatpush1.msra.mxu0 0.0
        %1567 = vmatprep.subr.mxu0 0.0
        %1568 = vmatpush1.msra.mxu0 0.0
        %1569 = vmatprep.subr.mxu0 0.0
        %1570 = vmatpush1.msra.mxu0 0.0
        %1571 = vmatprep.subr.mxu0 0.0
        %1572 = vmatpush1.msra.mxu0 0.0
        %1573 = vmatprep.subr.mxu0 0.0
        %1574 = vmatpush1.msra.mxu0 0.0
        %1575 = vmatprep.subr.mxu0 0.0
        %1576 = vmatpush1.msra.mxu0 0.0
        %1577 = vmatprep.subr.mxu0 0.0
        %1578 = vmatpush1.msra.mxu0 0.0
        %1579 = vmatprep.subr.mxu0 0.0
        %1580 = vmatpush1.msra.mxu0 0.0
        %1581 = vmatprep.subr.mxu0 0.0
        %1582 = vmatpush1.msra.mxu0 0.0
        %1583 = vmatprep.subr.mxu0 0.0
        %1584 = vmatpush1.msra.mxu0 0.0
        %1585 = vmatprep.subr.mxu0 0.0
        %1586 = vmatpush1.msra.mxu0 0.0
        %1587 = vmatprep.subr.mxu0 0.0
        %1588 = vmatpush1.msra.mxu0 0.0
        %1589 = vmatprep.mubr.f32.mxu0 0.0
        %1590 = vmatmul.mubr.f32.gmra.mrb[0].mxu0 %v1520
        %v1591 = vpop.f32.mrb[0].mxu0
        %v1592 = vadd.f32 0.0, %v1591
        %v1593 = vpop.f32.mrb[0].mxu0
        %1594 = vdwg.mxu0
        %1595 = vst.msk [vmem:[#allocation2] sm:$0xff] %vm1427, %v1592
        %1596 = vrot.lane.b32.xlu0 %v1340, 112
        %v1597 = vpop.permute.xlu0 %1596
        %1598 = vrot.lane.b32.xlu0 %v1424, 112
        %v1599 = vpop.permute.xlu0 %1598
        %v1600 = vsel %vm1427, %v1597, 0
        %v1602 = vsel %vm1427, %v1599, 0
        %1604 = vmatprep.subr.mxu0 0.0
        %1605 = vmatpush1.xpose.msra.mxu0 %v1602
        %1606 = vmatprep.subr.mxu0 0.0
        %1607 = vmatpush1.xpose.msra.mxu0 0.0
        %1608 = vmatprep.subr.mxu0 0.0
        %1609 = vmatpush1.xpose.msra.mxu0 0.0
        %1610 = vmatprep.subr.mxu0 0.0
        %1611 = vmatpush1.xpose.msra.mxu0 0.0
        %1612 = vmatprep.subr.mxu0 0.0
        %1613 = vmatpush1.xpose.msra.mxu0 0.0
        %1614 = vmatprep.subr.mxu0 0.0
        %1615 = vmatpush1.xpose.msra.mxu0 0.0
        %1616 = vmatprep.subr.mxu0 0.0
        %1617 = vmatpush1.xpose.msra.mxu0 0.0
        %1618 = vmatprep.subr.mxu0 0.0
        %1619 = vmatpush1.xpose.msra.mxu0 0.0
        %1620 = vmatprep.subr.mxu0 0.0
        %1621 = vmatpush1.xpose.msra.mxu0 0.0
        %1622 = vmatprep.subr.mxu0 0.0
        %1623 = vmatpush1.xpose.msra.mxu0 0.0
        %1624 = vmatprep.subr.mxu0 0.0
        %1625 = vmatpush1.xpose.msra.mxu0 0.0
        %1626 = vmatprep.subr.mxu0 0.0
        %1627 = vmatpush1.xpose.msra.mxu0 0.0
        %1628 = vmatprep.subr.mxu0 0.0
        %1629 = vmatpush1.xpose.msra.mxu0 0.0
        %1630 = vmatprep.subr.mxu0 0.0
        %1631 = vmatpush1.xpose.msra.mxu0 0.0
        %1632 = vmatprep.subr.mxu0 0.0
        %1633 = vmatpush1.xpose.msra.mxu0 0.0
        %1634 = vmatprep.subr.mxu0 0.0
        %1635 = vmatpush1.xpose.msra.mxu0 0.0
        %1636 = vmatprep.subr.mxu0 0.0
        %1637 = vmatpush1.xpose.msra.mxu0 0.0
        %1638 = vmatprep.subr.mxu0 0.0
        %1639 = vmatpush1.xpose.msra.mxu0 0.0
        %1640 = vmatprep.subr.mxu0 0.0
        %1641 = vmatpush1.xpose.msra.mxu0 0.0
        %1642 = vmatprep.subr.mxu0 0.0
        %1643 = vmatpush1.xpose.msra.mxu0 0.0
        %1644 = vmatprep.subr.mxu0 0.0
        %1645 = vmatpush1.xpose.msra.mxu0 0.0
        %1646 = vmatprep.subr.mxu0 0.0
        %1647 = vmatpush1.xpose.msra.mxu0 0.0
        %1648 = vmatprep.subr.mxu0 0.0
        %1649 = vmatpush1.xpose.msra.mxu0 0.0
        %1650 = vmatprep.subr.mxu0 0.0
        %1651 = vmatpush1.xpose.msra.mxu0 0.0
        %1652 = vmatprep.subr.mxu0 0.0
        %1653 = vmatpush1.xpose.msra.mxu0 0.0
        %1654 = vmatprep.subr.mxu0 0.0
        %1655 = vmatpush1.xpose.msra.mxu0 0.0
        %1656 = vmatprep.subr.mxu0 0.0
        %1657 = vmatpush1.xpose.msra.mxu0 0.0
        %1658 = vmatprep.subr.mxu0 0.0
        %1659 = vmatpush1.xpose.msra.mxu0 0.0
        %1660 = vmatprep.subr.mxu0 0.0
        %1661 = vmatpush1.xpose.msra.mxu0 0.0
        %1662 = vmatprep.subr.mxu0 0.0
        %1663 = vmatpush1.xpose.msra.mxu0 0.0
        %1664 = vmatprep.subr.mxu0 0.0
        %1665 = vmatpush1.xpose.msra.mxu0 0.0
        %1666 = vmatprep.subr.mxu0 0.0
        %1667 = vmatpush1.xpose.msra.mxu0 0.0
        %1668 = vmatprep.mubr.f32.mxu0 0.0
        %1669 = vmatmul.mubr.f32.gmra.mrb[0].mxu0 %v1600
        %v1670 = vpop.f32.mrb[0].mxu0
        %v1671 = vadd.f32 0.0, %v1670
        %v1672 = vpop.f32.mrb[0].mxu0
        %1673 = vdwg.mxu0
        %v1674 = vmul.f32 %v1671, 0.25
        %v1675 = vsel %vm1505, %v1674, -inf
        %1676 = vmax.xlane.f32.xlu0 %v1675
        %v1677 = vpop.xlane.xlu0 %1676
        %v1678 = vsub.f32 %v1674, %v1677
        %v1679 = vmul.f32 %v1678, 1.442695
        %v1680 = vpow.pop %v1679
        %v1681 = vsel %vm1505, %v1680, 0.0
        %1682 = vadd.xlane.f32.xlu0 %v1681
        %v1683 = vpop.xlane.xlu0 %1682
        %v1684 = vrcp.pop %v1683
        %v1685 = vmul.f32 %v1680, %v1684
        %1686 = vrot.lane.b32.xlu0 %v1424, 80
        %v1687 = vpop.permute.xlu0 %1686
        %v1689 = vsel %vm1505, %v1685, 0
        %v1691 = vsel %vm1522, %v1687, 0
        %1693 = vmatprep.subr.mxu0 0.0
        %1694 = vmatpush1.msra.mxu0 %v1691
        %1695 = vmatprep.subr.mxu0 0.0
        %1696 = vmatpush1.msra.mxu0 0.0
        %1697 = vmatprep.subr.mxu0 0.0
        %1698 = vmatpush1.msra.mxu0 0.0
        %1699 = vmatprep.subr.mxu0 0.0
        %1700 = vmatpush1.msra.mxu0 0.0
        %1701 = vmatprep.subr.mxu0 0.0
        %1702 = vmatpush1.msra.mxu0 0.0
        %1703 = vmatprep.subr.mxu0 0.0
        %1704 = vmatpush1.msra.mxu0 0.0
        %1705 = vmatprep.subr.mxu0 0.0
        %1706 = vmatpush1.msra.mxu0 0.0
        %1707 = vmatprep.subr.mxu0 0.0
        %1708 = vmatpush1.msra.mxu0 0.0
        %1709 = vmatprep.subr.mxu0 0.0
        %1710 = vmatpush1.msra.mxu0 0.0
        %1711 = vmatprep.subr.mxu0 0.0
        %1712 = vmatpush1.msra.mxu0 0.0
        %1713 = vmatprep.subr.mxu0 0.0
        %1714 = vmatpush1.msra.mxu0 0.0
        %1715 = vmatprep.subr.mxu0 0.0
        %1716 = vmatpush1.msra.mxu0 0.0
        %1717 = vmatprep.subr.mxu0 0.0
        %1718 = vmatpush1.msra.mxu0 0.0
        %1719 = vmatprep.subr.mxu0 0.0
        %1720 = vmatpush1.msra.mxu0 0.0
        %1721 = vmatprep.subr.mxu0 0.0
        %1722 = vmatpush1.msra.mxu0 0.0
        %1723 = vmatprep.subr.mxu0 0.0
        %1724 = vmatpush1.msra.mxu0 0.0
        %1725 = vmatprep.subr.mxu0 0.0
        %1726 = vmatpush1.msra.mxu0 0.0
        %1727 = vmatprep.subr.mxu0 0.0
        %1728 = vmatpush1.msra.mxu0 0.0
        %1729 = vmatprep.subr.mxu0 0.0
        %1730 = vmatpush1.msra.mxu0 0.0
        %1731 = vmatprep.subr.mxu0 0.0
        %1732 = vmatpush1.msra.mxu0 0.0
        %1733 = vmatprep.subr.mxu0 0.0
        %1734 = vmatpush1.msra.mxu0 0.0
        %1735 = vmatprep.subr.mxu0 0.0
        %1736 = vmatpush1.msra.mxu0 0.0
        %1737 = vmatprep.subr.mxu0 0.0
        %1738 = vmatpush1.msra.mxu0 0.0
        %1739 = vmatprep.subr.mxu0 0.0
        %1740 = vmatpush1.msra.mxu0 0.0
        %1741 = vmatprep.subr.mxu0 0.0
        %1742 = vmatpush1.msra.mxu0 0.0
        %1743 = vmatprep.subr.mxu0 0.0
        %1744 = vmatpush1.msra.mxu0 0.0
        %1745 = vmatprep.subr.mxu0 0.0
        %1746 = vmatpush1.msra.mxu0 0.0
        %1747 = vmatprep.subr.mxu0 0.0
        %1748 = vmatpush1.msra.mxu0 0.0
        %1749 = vmatprep.subr.mxu0 0.0
        %1750 = vmatpush1.msra.mxu0 0.0
        %1751 = vmatprep.subr.mxu0 0.0
        %1752 = vmatpush1.msra.mxu0 0.0
        %1753 = vmatprep.subr.mxu0 0.0
        %1754 = vmatpush1.msra.mxu0 0.0
        %1755 = vmatprep.subr.mxu0 0.0
        %1756 = vmatpush1.msra.mxu0 0.0
        %1757 = vmatprep.mubr.f32.mxu0 0.0
        %1758 = vmatmul.mubr.f32.gmra.mrb[0].mxu0 %v1689
        %v1759 = vpop.f32.mrb[0].mxu0
        %v1760 = vadd.f32 0.0, %v1759
        %v1761 = vpop.f32.mrb[0].mxu0
        %1762 = vdwg.mxu0
        %1764 = vrot.lane.b32.xlu0 %v1760, 16
        %v1765 = vpop.permute.xlu0 %1764
        %vm1767 = vcmask 261248
        %1768 = vst.msk [vmem:[#allocation2] sm:$0xff] %vm1767, %v1765
        %v1769 = vld [vmem:[#allocation2] sm:$0xff]
        %s1770 = scalar_lea.vmem %s3, 64
        %v1771 = vld [vmem:[%s1770] sm:$0xff]
        %v1772 = vld [vmem:[%s1770 + $0x8] sm:$0xff]
        %v1773 = vld [vmem:[%s1770 + $0x10] sm:$0xff]
        %v1774 = vld [vmem:[%s1770 + $0x18] sm:$0xff]
        %v1775 = vlaneseq
        %v1776 = vshrl.u32 %v1775, 7
        %v1777 = vsub.s32 2, %v1776
        %v1778 = vrot.slane %v383, %v1777
        %v1780 = vsel %vm396, %v1769, 0
        %1782 = vmatprep.subr.mxu0 0.0
        %1783 = vmatpush1.msra.mxu0 %v1771
        %1784 = vmatprep.subr.mxu0 0.0
        %1785 = vmatpush1.msra.mxu0 %v1772
        %1786 = vmatprep.subr.mxu0 0.0
        %1787 = vmatpush1.msra.mxu0 %v1773
        %1788 = vmatprep.subr.mxu0 0.0
        %1789 = vmatpush1.msra.mxu0 %v1774
        %1790 = vmatprep.subr.mxu0 0.0
        %1791 = vmatpush1.msra.mxu0 0.0
        %1792 = vmatprep.subr.mxu0 0.0
        %1793 = vmatpush1.msra.mxu0 0.0
        %1794 = vmatprep.subr.mxu0 0.0
        %1795 = vmatpush1.msra.mxu0 0.0
        %1796 = vmatprep.subr.mxu0 0.0
        %1797 = vmatpush1.msra.mxu0 0.0
        %1798 = vmatprep.subr.mxu0 0.0
        %1799 = vmatpush1.msra.mxu0 0.0
        %1800 = vmatprep.subr.mxu0 0.0
        %1801 = vmatpush1.msra.mxu0 0.0
        %1802 = vmatprep.subr.mxu0 0.0
        %1803 = vmatpush1.msra.mxu0 0.0
        %1804 = vmatprep.subr.mxu0 0.0
        %1805 = vmatpush1.msra.mxu0 0.0
        %1806 = vmatprep.subr.mxu0 0.0
        %1807 = vmatpush1.msra.mxu0 0.0
        %1808 = vmatprep.subr.mxu0 0.0
        %1809 = vmatpush1.msra.mxu0 0.0
        %1810 = vmatprep.subr.mxu0 0.0
        %1811 = vmatpush1.msra.mxu0 0.0
        %1812 = vmatprep.subr.mxu0 0.0
        %1813 = vmatpush1.msra.mxu0 0.0
        %1814 = vmatprep.subr.mxu0 0.0
        %1815 = vmatpush1.msra.mxu0 0.0
        %1816 = vmatprep.subr.mxu0 0.0
        %1817 = vmatpush1.msra.mxu0 0.0
        %1818 = vmatprep.subr.mxu0 0.0
        %1819 = vmatpush1.msra.mxu0 0.0
        %1820 = vmatprep.subr.mxu0 0.0
        %1821 = vmatpush1.msra.mxu0 0.0
        %1822 = vmatprep.subr.mxu0 0.0
        %1823 = vmatpush1.msra.mxu0 0.0
        %1824 = vmatprep.subr.mxu0 0.0
        %1825 = vmatpush1.msra.mxu0 0.0
        %1826 = vmatprep.subr.mxu0 0.0
        %1827 = vmatpush1.msra.mxu0 0.0
        %1828 = vmatprep.subr.mxu0 0.0
        %1829 = vmatpush1.msra.mxu0 0.0
        %1830 = vmatprep.subr.mxu0 0.0
        %1831 = vmatpush1.msra.mxu0 0.0
        %1832 = vmatprep.subr.mxu0 0.0
        %1833 = vmatpush1.msra.mxu0 0.0
        %1834 = vmatprep.subr.mxu0 0.0
        %1835 = vmatpush1.msra.mxu0 0.0
        %1836 = vmatprep.subr.mxu0 0.0
        %1837 = vmatpush1.msra.mxu0 0.0
        %1838 = vmatprep.subr.mxu0 0.0
        %1839 = vmatpush1.msra.mxu0 0.0
        %1840 = vmatprep.subr.mxu0 0.0
        %1841 = vmatpush1.msra.mxu0 0.0
        %1842 = vmatprep.subr.mxu0 0.0
        %1843 = vmatpush1.msra.mxu0 0.0
        %1844 = vmatprep.subr.mxu0 0.0
        %1845 = vmatpush1.msra.mxu0 0.0
        %1846 = vmatprep.mubr.f32.mxu0 0.0
        %1847 = vmatmul.mubr.f32.gmra.mrb[0].mxu0 %v1780
        %v1848 = vpop.f32.mrb[0].mxu0
        %v1849 = vadd.f32 %v1778, %v1848
        %v1850 = vpop.f32.mrb[0].mxu0
        %1851 = vdwg.mxu0
        %v1852 = vadd.f32 %v1259, %v1849
        %v1853 = vsel %vm396, %v1852, 0.0
        %1854 = vadd.xlane.f32.xlu0 %v1853
        %v1855 = vpop.xlane.xlu0 %1854
        %v1856 = vmul.f32 %v1855, %v1239
        %v1857 = vsub.f32 %v1852, %v1856
        %v1858 = vmul.f32 %v1857, %v1857
        %v1859 = vsel %vm396, %v1858, 0.0
        %1860 = vadd.xlane.f32.xlu0 %v1859
        %v1861 = vpop.xlane.xlu0 %1860
        %v1862 = vmul.f32 %v1861, %v1239
        %v1863 = vadd.f32 %v1862, 1e-05
        %v1864 = vrsqrt.pop %v1863
        %v1865 = vmul.f32 %v1857, %v1864
        %v1866 = vlaneseq
        %v1867 = vshrl.u32 %v1866, 7
        %v1868 = vsub.s32 6, %v1867
        %v1869 = vrot.slane %v383, %v1868
        %v1870 = vmul.f32 %v1865, %v1869
        %v1871 = vlaneseq
        %v1872 = vshrl.u32 %v1871, 7
        %v1873 = vsub.s32 7, %v1872
        %v1874 = vrot.slane %v383, %v1873
        %v1875 = vadd.f32 %v1870, %v1874
        %v1876 = vld [vmem:[%s6] sm:$0xff]
        %v1877 = vld [vmem:[%s6 + $0x8] sm:$0xff]
        %v1878 = vld [vmem:[%s6 + $0x10] sm:$0xff]
        %v1879 = vld [vmem:[%s6 + $0x18] sm:$0xff]
        %v1880 = vld [vmem:[%s7] sm:$0x1]
        %v1882 = vlaneseq
        %v1883 = vshrl.u32 %v1882, 7
        %v1884 = vsub.s32 0, %v1883
        %v1885 = vrot.slane %v1880, %v1884
        %v1888 = vsel %vm396, %v1875, 0
        %1890 = vmatprep.subr.mxu0 0.0
        %1891 = vmatpush1.msra.mxu0 %v1876
        %1892 = vmatprep.subr.mxu0 0.0
        %1893 = vmatpush1.msra.mxu0 %v1877
        %1894 = vmatprep.subr.mxu0 0.0
        %1895 = vmatpush1.msra.mxu0 %v1878
        %1896 = vmatprep.subr.mxu0 0.0
        %1897 = vmatpush1.msra.mxu0 %v1879
        %1898 = vmatprep.subr.mxu0 0.0
        %1899 = vmatpush1.msra.mxu0 0.0
        %1900 = vmatprep.subr.mxu0 0.0
        %1901 = vmatpush1.msra.mxu0 0.0
        %1902 = vmatprep.subr.mxu0 0.0
        %1903 = vmatpush1.msra.mxu0 0.0
        %1904 = vmatprep.subr.mxu0 0.0
        %1905 = vmatpush1.msra.mxu0 0.0
        %1906 = vmatprep.subr.mxu0 0.0
        %1907 = vmatpush1.msra.mxu0 0.0
        %1908 = vmatprep.subr.mxu0 0.0
        %1909 = vmatpush1.msra.mxu0 0.0
        %1910 = vmatprep.subr.mxu0 0.0
        %1911 = vmatpush1.msra.mxu0 0.0
        %1912 = vmatprep.subr.mxu0 0.0
        %1913 = vmatpush1.msra.mxu0 0.0
        %1914 = vmatprep.subr.mxu0 0.0
        %1915 = vmatpush1.msra.mxu0 0.0
        %1916 = vmatprep.subr.mxu0 0.0
        %1917 = vmatpush1.msra.mxu0 0.0
        %1918 = vmatprep.subr.mxu0 0.0
        %1919 = vmatpush1.msra.mxu0 0.0
        %1920 = vmatprep.subr.mxu0 0.0
        %1921 = vmatpush1.msra.mxu0 0.0
        %1922 = vmatprep.subr.mxu0 0.0
        %1923 = vmatpush1.msra.mxu0 0.0
        %1924 = vmatprep.subr.mxu0 0.0
        %1925 = vmatpush1.msra.mxu0 0.0
        %1926 = vmatprep.subr.mxu0 0.0
        %1927 = vmatpush1.msra.mxu0 0.0
        %1928 = vmatprep.subr.mxu0 0.0
        %1929 = vmatpush1.msra.mxu0 0.0
        %1930 = vmatprep.subr.mxu0 0.0
        %1931 = vmatpush1.msra.mxu0 0.0
        %1932 = vmatprep.subr.mxu0 0.0
        %1933 = vmatpush1.msra.mxu0 0.0
        %1934 = vmatprep.subr.mxu0 0.0
        %1935 = vmatpush1.msra.mxu0 0.0
        %1936 = vmatprep.subr.mxu0 0.0
        %1937 = vmatpush1.msra.mxu0 0.0
        %1938 = vmatprep.subr.mxu0 0.0
        %1939 = vmatpush1.msra.mxu0 0.0
        %1940 = vmatprep.subr.mxu0 0.0
        %1941 = vmatpush1.msra.mxu0 0.0
        %1942 = vmatprep.subr.mxu0 0.0
        %1943 = vmatpush1.msra.mxu0 0.0
        %1944 = vmatprep.subr.mxu0 0.0
        %1945 = vmatpush1.msra.mxu0 0.0
        %1946 = vmatprep.subr.mxu0 0.0
        %1947 = vmatpush1.msra.mxu0 0.0
        %1948 = vmatprep.subr.mxu0 0.0
        %1949 = vmatpush1.msra.mxu0 0.0
        %1950 = vmatprep.subr.mxu0 0.0
        %1951 = vmatpush1.msra.mxu0 0.0
        %1952 = vmatprep.subr.mxu0 0.0
        %1953 = vmatpush1.msra.mxu0 0.0
        %1954 = vmatprep.mubr.f32.mxu0 0.0
        %1955 = vmatmul.mubr.f32.gmra.mrb[0].mxu0 %v1888
        %v1956 = vpop.f32.mrb[0].mxu0
        %v1957 = vadd.f32 %v1885, %v1956
        %v1958 = vpop.f32.mrb[0].mxu0
        %1959 = vdwg.mxu0
        %v1960 = vmul.f32 %v1957, 0.5
        %v1961 = vmul.f32 %v1957, %v1957
        %v1962 = vmul.f32 %v1961, %v1957
        %v1963 = vmul.f32 %v1962, 0.044715
        %v1964 = vadd.f32 %v1957, %v1963
        %v1965 = vmul.f32 %v1964, 0.7978846
        %v1966 = vtanh.pop %v1965
        %v1967 = vadd.f32 %v1966, 1.0
        %v1968 = vmul.f32 %v1960, %v1967
        %v1969 = vld [vmem:[%s8] sm:$0xff]
        %v1970 = vld [vmem:[%s8 + $0x8] sm:$0xff]
        %v1971 = vld [vmem:[%s8 + $0x10] sm:$0xff]
        %v1972 = vld [vmem:[%s8 + $0x18] sm:$0xff]
        %v1973 = vld [vmem:[%s8 + $0x20] sm:$0xff]
        %v1974 = vld [vmem:[%s8 + $0x28] sm:$0xff]
        %v1975 = vld [vmem:[%s8 + $0x30] sm:$0xff]
        %v1976 = vld [vmem:[%s8 + $0x38] sm:$0xff]
        %v1977 = vlaneseq
        %v1978 = vshrl.u32 %v1977, 7
        %v1979 = vsub.s32 3, %v1978
        %v1980 = vrot.slane %v383, %v1979
        %vm1981 = vcmask 523264
        %v1983 = vsel %vm1981, %v1968, 0
        %1985 = vmatprep.subr.mxu0 0.0
        %1986 = vmatpush1.msra.mxu0 %v1969
        %1987 = vmatprep.subr.mxu0 0.0
        %1988 = vmatpush1.msra.mxu0 %v1970
        %1989 = vmatprep.subr.mxu0 0.0
        %1990 = vmatpush1.msra.mxu0 %v1971
        %1991 = vmatprep.subr.mxu0 0.0
        %1992 = vmatpush1.msra.mxu0 %v1972
        %1993 = vmatprep.subr.mxu0 0.0
        %1994 = vmatpush1.msra.mxu0 %v1973
        %1995 = vmatprep.subr.mxu0 0.0
        %1996 = vmatpush1.msra.mxu0 %v1974
        %1997 = vmatprep.subr.mxu0 0.0
        %1998 = vmatpush1.msra.mxu0 %v1975
        %1999 = vmatprep.subr.mxu0 0.0
        %2000 = vmatpush1.msra.mxu0 %v1976
        %2001 = vmatprep.subr.mxu0 0.0
        %2002 = vmatpush1.msra.mxu0 0.0
        %2003 = vmatprep.subr.mxu0 0.0
        %2004 = vmatpush1.msra.mxu0 0.0
        %2005 = vmatprep.subr.mxu0 0.0
        %2006 = vmatpush1.msra.mxu0 0.0
        %2007 = vmatprep.subr.mxu0 0.0
        %2008 = vmatpush1.msra.mxu0 0.0
        %2009 = vmatprep.subr.mxu0 0.0
        %2010 = vmatpush1.msra.mxu0 0.0
        %2011 = vmatprep.subr.mxu0 0.0
        %2012 = vmatpush1.msra.mxu0 0.0
        %2013 = vmatprep.subr.mxu0 0.0
        %2014 = vmatpush1.msra.mxu0 0.0
        %2015 = vmatprep.subr.mxu0 0.0
        %2016 = vmatpush1.msra.mxu0 0.0
        %2017 = vmatprep.subr.mxu0 0.0
        %2018 = vmatpush1.msra.mxu0 0.0
        %2019 = vmatprep.subr.mxu0 0.0
        %2020 = vmatpush1.msra.mxu0 0.0
        %2021 = vmatprep.subr.mxu0 0.0
        %2022 = vmatpush1.msra.mxu0 0.0
        %2023 = vmatprep.subr.mxu0 0.0
        %2024 = vmatpush1.msra.mxu0 0.0
        %2025 = vmatprep.subr.mxu0 0.0
        %2026 = vmatpush1.msra.mxu0 0.0
        %2027 = vmatprep.subr.mxu0 0.0
        %2028 = vmatpush1.msra.mxu0 0.0
        %2029 = vmatprep.subr.mxu0 0.0
        %2030 = vmatpush1.msra.mxu0 0.0
        %2031 = vmatprep.subr.mxu0 0.0
        %2032 = vmatpush1.msra.mxu0 0.0
        %2033 = vmatprep.subr.mxu0 0.0
        %2034 = vmatpush1.msra.mxu0 0.0
        %2035 = vmatprep.subr.mxu0 0.0
        %2036 = vmatpush1.msra.mxu0 0.0
        %2037 = vmatprep.subr.mxu0 0.0
        %2038 = vmatpush1.msra.mxu0 0.0
        %2039 = vmatprep.subr.mxu0 0.0
        %2040 = vmatpush1.msra.mxu0 0.0
        %2041 = vmatprep.subr.mxu0 0.0
        %2042 = vmatpush1.msra.mxu0 0.0
        %2043 = vmatprep.subr.mxu0 0.0
        %2044 = vmatpush1.msra.mxu0 0.0
        %2045 = vmatprep.subr.mxu0 0.0
        %2046 = vmatpush1.msra.mxu0 0.0
        %2047 = vmatprep.subr.mxu0 0.0
        %2048 = vmatpush1.msra.mxu0 0.0
        %2049 = vmatprep.mubr.f32.mxu0 0.0
        %2050 = vmatmul.mubr.f32.gmra.mrb[0].mxu0 %v1983
        %v2051 = vpop.f32.mrb[0].mxu0
        %v2052 = vadd.f32 %v1980, %v2051
        %v2053 = vpop.f32.mrb[0].mxu0
        %2054 = vdwg.mxu0
        %v2055 = vadd.f32 %v1875, %v2052
        %v2056 = vsel %vm396, %v2055, 0.0
        %2057 = vadd.xlane.f32.xlu0 %v2056
        %v2058 = vpop.xlane.xlu0 %2057
        %v2059 = vmul.f32 %v2058, %v1239
        %v2060 = vsub.f32 %v2055, %v2059
        %v2061 = vmul.f32 %v2060, %v2060
        %v2062 = vsel %vm396, %v2061, 0.0
        %2063 = vadd.xlane.f32.xlu0 %v2062
        %v2064 = vpop.xlane.xlu0 %2063
        %v2065 = vmul.f32 %v2064, %v1239
        %v2066 = vadd.f32 %v2065, 1e-05
        %v2067 = vrsqrt.pop %v2066
        %v2068 = vmul.f32 %v2060, %v2067
        %v2069 = vlaneseq
        %v2070 = vshrl.u32 %v2069, 7
        %v2071 = vsub.s32 0, %v2070
        %v2072 = vrot.slane %v384, %v2071
        %v2073 = vmul.f32 %v2068, %v2072
        %v2074 = vlaneseq
        %v2075 = vshrl.u32 %v2074, 7
        %v2076 = vsub.s32 1, %v2075
        %v2077 = vrot.slane %v384, %v2076
        %v2078 = vadd.f32 %v2073, %v2077
        %2079 = vst.msk [vmem:[%s377] sm:$0xff] %vm396, %v2078
        %s2080 = sand.u32 %s269, 1
        %s2081 = scalar_lea.sflag [#allocation4], %s2080
        %s2082 = sand.u32 %s269, 1
        %s2083 = smul.addr %s2082, 8
        %s2084 = scalar_lea.vmem [#allocation3], %s2083
        // Predicated region
        $region65: #{eeg_transformer_block.1} parent=63 // pred_check
          %p2085 = pneg %p279
        $region66: #{eeg_transformer_block.1} parent=63 // pred_check_branch
          %2087 = sbr.rel (%p2085) target = $region68
        $region67: #{eeg_transformer_block.1} parent=63 // pred_region
          %s2089 = ssub.s32 128, 128
          %2090 = vsyncadd %s2081, %s2089
          %s2091 = smul.addr %s25, 128
          %s2092 = scalar_lea.hbm %s11, %s2091
          %s2094 = sshll.u32 %s2084, 4
          %s2095 = int_to_ptr.vmem [resolvable:$true] %s2094
          %2097 = dma.vmem_to_hbm [thread:$0]  %s2095, 128, %s2092, %s2081
        $region68: #{eeg_transformer_block.1} parent=63 // pred_fallthru
          _
      $region64: #{eeg_transformer_block.1} parent=5 // pred_fallthru
        _
      %p2098 = scmp.le.s32.totalorder 2, %s20
      // Predicated region
      $region69: #{eeg_transformer_block.1} parent=5 // pred_check
        %p2099 = pneg %p2098
      $region70: #{eeg_transformer_block.1} parent=5 // pred_check_branch
        %2101 = sbr.rel (%p2099) target = $region72
      $region71: #{eeg_transformer_block.1} parent=5 // pred_region
        %s2102 = ssub.s32 %s20, 2
        // Predicated region
        $region73: #{eeg_transformer_block.1} parent=71 // pred_check
          %p2103 = pneg %p285
        $region74: #{eeg_transformer_block.1} parent=71 // pred_check_branch
          %2105 = sbr.rel (%p2103) target = $region76
        $region75: #{eeg_transformer_block.1} parent=71 // pred_region
          %s2106 = sand.u32 %s270, 1
          %s2107 = scalar_lea.sflag [#allocation4], %s2106
          %s2108 = sand.u32 %s270, 1
          %s2109 = smul.addr %s2108, 8
          %s2110 = scalar_lea.vmem [#allocation3], %s2109
          %2111 = dma.done %s2107, 128
        $region76: #{eeg_transformer_block.1} parent=71 // pred_fallthru
          _
      $region72: #{eeg_transformer_block.1} parent=5 // pred_fallthru
        _
    $region6: #{eeg_transformer_block.1} parent=1 // loop_footer
      %s24 = sadd.s32 1, %s20
    $region7: #{eeg_transformer_block.1} parent=1 // loop_footer_branch
      %19 = sbr.rel target = $region3
    $region8: #{eeg_transformer_block.1} parent=1 // loop_exit
      _
    %2112 = vsyncpa [#allocation4], 1
    %s2113 = scalar_lea.sflag [#allocation4], 1
    %2114 = vsyncpa %s2113, 1

</llo_original>
